<compile_context>
chip_gen: v7x
topology: tpu7x:2x2x1
jax: 0.10.0
libtpu: 0.0.40
codegen_flags: <defaults>
</compile_context>

<pallas_src>
import jax
import jax.numpy as jnp
from jax.experimental import pallas as pl
from jax.experimental.pallas import tpu as pltpu

NEG_POS_RATIO = 3
WT_LOC = 1.0  # module default; update branch is skipped since curr_iter > max_iter


def _multibox_loss_kernel(conf_ref, pred_ref, gt_ref, labels_ref, out_ref):
    # Block shapes: conf (1, C, N), pred/gt (1, 4, N), labels (1, 1, N),
    # out (1, 2, 128).  Everything per-anchor is kept as (1, N) / (coords, N)
    # so N stays on the 128-lane axis.
    C = conf_ref.shape[1]

    labels = labels_ref[0]                       # (1, N) int32
    pos_mask = labels > 0                        # (1, N)

    # ---- log-softmax over classes: short unrolled loops over the C sublane rows
    row0 = conf_ref[0, 0:1, :].astype(jnp.float32)               # logits of class 0
    cmax = row0
    for c in range(1, C):
        cmax = jnp.maximum(cmax, conf_ref[0, c:c + 1, :].astype(jnp.float32))

    sum_exp = jnp.zeros_like(cmax)
    logit_at_label = jnp.zeros_like(cmax)
    for c in range(C):
        row = conf_ref[0, c:c + 1, :].astype(jnp.float32)
        sum_exp = sum_exp + jnp.exp(row - cmax)
        # gather logits at the gt label without a (N, C) one-hot
        logit_at_label = logit_at_label + jnp.where(labels == c, row, 0.0)

    lse = cmax + jnp.log(sum_exp)                # (1, N)
    bg_loss = lse - row0                         # -log_softmax(conf)[..., 0]  (>= 0)
    ce = lse - logit_at_label                    # per-anchor cross entropy

    # ---- hard negative mining: exact top-k threshold via bitwise bisection ----
    num_pos = jnp.sum(pos_mask.astype(jnp.int32))            # scalar, this row
    num_neg = num_pos * NEG_POS_RATIO

    # Monotone int32 key: positives -> 0; negatives -> f32 bits(bg_loss) + 1.
    # bg_loss >= 0, so its raw bit pattern orders exactly like the float value.
    key = jnp.where(pos_mask, 0, pltpu.bitcast(bg_loss, jnp.int32) + 1)   # (1, N)

    # Greedy MSB-first search for the largest threshold t with
    # count(key >= t) >= num_neg.  Then (key >= t) selects exactly the
    # top-num_neg background losses.  Positives (key == 0) only enter the mask
    # when num_neg exceeds the number of negatives, where it is harmless
    # because sel_mask = pos | neg.  31 steps of O(N) lane-dense compares.
    t = jnp.int32(0)
    for bit in range(30, -1, -1):
        cand = t + jnp.int32(1 << bit)
        cnt = jnp.sum((key >= cand).astype(jnp.int32))
        t = jnp.where(cnt >= num_neg, cand, t)

    neg_mask = key >= t
    sel_mask = pos_mask | neg_mask

    class_loss = jnp.sum(jnp.where(sel_mask, ce, 0.0))

    # ---- smooth L1 (beta = 1) over positive anchors (coords on sublanes) ----
    d = pred_ref[0].astype(jnp.float32) - gt_ref[0].astype(jnp.float32)   # (4, N)
    ad = jnp.abs(d)
    sl1 = jnp.where(ad < 1.0, 0.5 * d * d, ad - 0.5)
    reg_loss = jnp.sum(jnp.where(pos_mask, sl1, 0.0))

    total = reg_loss * jnp.float32(WT_LOC) + class_loss

    # Per-row partial results (loss numerator, num_pos); combined in the wrapper.
    out_ref[0, 0:1, :] = jnp.zeros((1, 128), jnp.float32) + total
    out_ref[0, 1:2, :] = jnp.zeros((1, 128), jnp.float32) + num_pos.astype(jnp.float32)


def multibox_loss(x_hat, y_hat, x, y):
    """Mirrors multibox_loss.forward(x_hat, y_hat, x, y).

    x_hat: predicted locations (B, N, 4)
    y_hat: confidence logits   (B, N, C)
    x:     gt locations        (B, N, 4)
    y:     gt labels           (B, N) int
    """
    B, N, C = y_hat.shape
    coords = x_hat.shape[-1]

    # Lane-dense layout: anchors (N) on the 128-lane axis.  Inputs are passed in
    # their native dtype (bf16 works too) and cast to f32 inside the kernel.
    conf_t = jnp.transpose(y_hat, (0, 2, 1))              # (B, C, N)
    pred_t = jnp.transpose(x_hat, (0, 2, 1))              # (B, coords, N)
    gt_t = jnp.transpose(x, (0, 2, 1))                    # (B, coords, N)
    labels = y.astype(jnp.int32).reshape(B, 1, N)         # (B, 1, N)

    out = pl.pallas_call(
        _multibox_loss_kernel,
        out_shape=jax.ShapeDtypeStruct((B, 2, 128), jnp.float32),
        grid=(B,),
        in_specs=[
            pl.BlockSpec((1, C, N), lambda b: (b, 0, 0)),
            pl.BlockSpec((1, coords, N), lambda b: (b, 0, 0)),
            pl.BlockSpec((1, coords, N), lambda b: (b, 0, 0)),
            pl.BlockSpec((1, 1, N), lambda b: (b, 0, 0)),
        ],
        out_specs=pl.BlockSpec((1, 2, 128), lambda b: (b, 0, 0)),
        compiler_params=pltpu.CompilerParams(
            dimension_semantics=("parallel",),      # batch rows across TCs (v7x)
            vmem_limit_bytes=32 * 1024 * 1024,      # explicit; safe on v5e/v6e/v7x
        ),
    )(conf_t, pred_t, gt_t, labels)

    loss_sum = jnp.sum(out[:, 0, 0])
    num_pos = jnp.sum(out[:, 1, 0])
    # Guard num_pos == 0 (the torch reference would divide by zero / NaN here).
    return loss_sum / jnp.maximum(num_pos, 1.0)


# ---------------- pure-JAX reference (for correctness check) ----------------
def _reference(x_hat, y_hat, x, y):
    conf = y_hat.astype(jnp.float32)
    pred = x_hat.astype(jnp.float32)
    gt = x.astype(jnp.float32)
    labels = y.astype(jnp.int32)

    logp = jax.nn.log_softmax(conf, axis=2)
    loss = -logp[:, :, 0]
    pos_mask = labels > 0
    num_pos_row = jnp.sum(pos_mask, axis=1, keepdims=True)
    num_neg_row = num_pos_row * NEG_POS_RATIO
    masked_loss = jnp.where(pos_mask, -jnp.inf, loss)
    # ranks via argsort-of-argsort (matches torch sort/sort trick)
    order = jnp.argsort(-masked_loss, axis=1, stable=True)
    ranks = jnp.argsort(order, axis=1, stable=True)
    neg_mask = ranks < num_neg_row
    sel_mask = pos_mask | neg_mask

    lse = jax.nn.logsumexp(conf, axis=2)
    logit_at_label = jnp.take_along_axis(conf, labels[:, :, None], axis=2)[..., 0]
    ce = lse - logit_at_label
    class_loss = jnp.sum(jnp.where(sel_mask, ce, 0.0))

    d = pred - gt
    ad = jnp.abs(d)
    sl1 = jnp.where(ad < 1.0, 0.5 * d * d, ad - 0.5)
    reg_loss = jnp.sum(jnp.where(pos_mask[:, :, None], sl1, 0.0))

    num_pos = jnp.sum(pos_mask.astype(jnp.float32))
    return (reg_loss * WT_LOC + class_loss) / num_pos


if __name__ == "__main__":
    key = jax.random.PRNGKey(0)
    k1, k2, k3, k4 = jax.random.split(key, 4)

    B, N, C, COORDS = 2, 64, 8, 4  # batch, anchors, classes, box coords

    x_hat = jax.random.normal(k1, (B, N, COORDS), dtype=jnp.float32)   # predicted locations
    y_hat = jax.random.normal(k2, (B, N, C), dtype=jnp.float32)        # confidence logits
    x = jax.random.normal(k3, (B, N, COORDS), dtype=jnp.float32)       # gt locations
    y = jax.random.randint(k4, (B, N), 0, C, dtype=jnp.int32)          # gt labels (0 = background)

    out = multibox_loss(x_hat, y_hat, x, y)
    out = jax.block_until_ready(out)

    ref = jax.block_until_ready(_reference(x_hat, y_hat, x, y))
    assert jnp.allclose(out, ref, rtol=1e-5, atol=1e-5), (out, ref)

    print("KERNEL_OK")
</pallas_src>

<mosaic_0001>
module attributes {stable_mosaic.version = 11 : i64} {
  func.func @_multibox_loss_kernel(%arg0: i32, %arg1: memref<1x8x64xf32, #tpu.memory_space<vmem>>, %arg2: memref<1x4x64xf32, #tpu.memory_space<vmem>>, %arg3: memref<1x4x64xf32, #tpu.memory_space<vmem>>, %arg4: memref<1x1x64xi32, #tpu.memory_space<vmem>>, %arg5: memref<1x2x128xf32, #tpu.memory_space<vmem>>) attributes {dimension_semantics = [#tpu.dimension_semantics<parallel>], iteration_bounds = array<i64: 2>, scalar_prefetch = 0 : i64, scratch_operands = 0 : i64, tpu.core_type = #tpu.core_type<tc>, window_params = [{transform_indices = @transform_0, window_bounds = array<i64: 1, 8, 64>}, {transform_indices = @transform_1, window_bounds = array<i64: 1, 4, 64>}, {transform_indices = @transform_2, window_bounds = array<i64: 1, 4, 64>}, {transform_indices = @transform_3, window_bounds = array<i64: 1, 1, 64>}, {transform_indices = @transform_4, window_bounds = array<i64: 1, 2, 128>}]} {
    %c0 = arith.constant 0 : index
    %c0_0 = arith.constant 0 : index
    %c0_1 = arith.constant 0 : index
    %0 = vector.load %arg4[%c0, %c0_0, %c0_1] : memref<1x1x64xi32, #tpu.memory_space<vmem>>, vector<1x1x64xi32>
    %1 = vector.shape_cast %0 : vector<1x1x64xi32> to vector<1x64xi32>
    %c0_i32 = arith.constant 0 : i32
    %2 = vector.broadcast %c0_i32 : i32 to vector<1x64xi32>
    %3 = arith.cmpi sgt, %1, %2 : vector<1x64xi32>
    %c0_2 = arith.constant 0 : index
    %c0_3 = arith.constant 0 : index
    %c0_4 = arith.constant 0 : index
    %4 = vector.load %arg1[%c0_2, %c0_3, %c0_4] : memref<1x8x64xf32, #tpu.memory_space<vmem>>, vector<1x1x64xf32>
    %5 = vector.shape_cast %4 : vector<1x1x64xf32> to vector<1x64xf32>
    %c0_5 = arith.constant 0 : index
    %c1 = arith.constant 1 : index
    %c0_6 = arith.constant 0 : index
    %6 = vector.load %arg1[%c0_5, %c1, %c0_6] : memref<1x8x64xf32, #tpu.memory_space<vmem>>, vector<1x1x64xf32>
    %7 = vector.shape_cast %6 : vector<1x1x64xf32> to vector<1x64xf32>
    %8 = arith.maximumf %5, %7 : vector<1x64xf32>
    %c0_7 = arith.constant 0 : index
    %c2 = arith.constant 2 : index
    %c0_8 = arith.constant 0 : index
    %9 = vector.load %arg1[%c0_7, %c2, %c0_8] : memref<1x8x64xf32, #tpu.memory_space<vmem>>, vector<1x1x64xf32>
    %10 = vector.shape_cast %9 : vector<1x1x64xf32> to vector<1x64xf32>
    %11 = arith.maximumf %8, %10 : vector<1x64xf32>
    %c0_9 = arith.constant 0 : index
    %c3 = arith.constant 3 : index
    %c0_10 = arith.constant 0 : index
    %12 = vector.load %arg1[%c0_9, %c3, %c0_10] : memref<1x8x64xf32, #tpu.memory_space<vmem>>, vector<1x1x64xf32>
    %13 = vector.shape_cast %12 : vector<1x1x64xf32> to vector<1x64xf32>
    %14 = arith.maximumf %11, %13 : vector<1x64xf32>
    %c0_11 = arith.constant 0 : index
    %c4 = arith.constant 4 : index
    %c0_12 = arith.constant 0 : index
    %15 = vector.load %arg1[%c0_11, %c4, %c0_12] : memref<1x8x64xf32, #tpu.memory_space<vmem>>, vector<1x1x64xf32>
    %16 = vector.shape_cast %15 : vector<1x1x64xf32> to vector<1x64xf32>
    %17 = arith.maximumf %14, %16 : vector<1x64xf32>
    %c0_13 = arith.constant 0 : index
    %c5 = arith.constant 5 : index
    %c0_14 = arith.constant 0 : index
    %18 = vector.load %arg1[%c0_13, %c5, %c0_14] : memref<1x8x64xf32, #tpu.memory_space<vmem>>, vector<1x1x64xf32>
    %19 = vector.shape_cast %18 : vector<1x1x64xf32> to vector<1x64xf32>
    %20 = arith.maximumf %17, %19 : vector<1x64xf32>
    %c0_15 = arith.constant 0 : index
    %c6 = arith.constant 6 : index
    %c0_16 = arith.constant 0 : index
    %21 = vector.load %arg1[%c0_15, %c6, %c0_16] : memref<1x8x64xf32, #tpu.memory_space<vmem>>, vector<1x1x64xf32>
    %22 = vector.shape_cast %21 : vector<1x1x64xf32> to vector<1x64xf32>
    %23 = arith.maximumf %20, %22 : vector<1x64xf32>
    %c0_17 = arith.constant 0 : index
    %c7 = arith.constant 7 : index
    %c0_18 = arith.constant 0 : index
    %24 = vector.load %arg1[%c0_17, %c7, %c0_18] : memref<1x8x64xf32, #tpu.memory_space<vmem>>, vector<1x1x64xf32>
    %25 = vector.shape_cast %24 : vector<1x1x64xf32> to vector<1x64xf32>
    %26 = arith.maximumf %23, %25 : vector<1x64xf32>
    %cst = arith.constant 0.000000e+00 : f32
    %27 = vector.broadcast %cst : f32 to vector<1x64xf32>
    %cst_19 = arith.constant 0.000000e+00 : f32
    %28 = vector.broadcast %cst_19 : f32 to vector<1x64xf32>
    %c0_20 = arith.constant 0 : index
    %c0_21 = arith.constant 0 : index
    %c0_22 = arith.constant 0 : index
    %29 = vector.load %arg1[%c0_20, %c0_21, %c0_22] : memref<1x8x64xf32, #tpu.memory_space<vmem>>, vector<1x1x64xf32>
    %30 = vector.shape_cast %29 : vector<1x1x64xf32> to vector<1x64xf32>
    %31 = arith.subf %30, %26 : vector<1x64xf32>
    %32 = math.exp %31 : vector<1x64xf32>
    %33 = arith.addf %27, %32 : vector<1x64xf32>
    %c0_i32_23 = arith.constant 0 : i32
    %34 = vector.broadcast %c0_i32_23 : i32 to vector<1x64xi32>
    %35 = arith.cmpi eq, %1, %34 : vector<1x64xi32>
    %cst_24 = arith.constant 0.000000e+00 : f32
    %36 = vector.broadcast %cst_24 : f32 to vector<1x64xf32>
    %37 = arith.select %35, %30, %36 : vector<1x64xi1>, vector<1x64xf32>
    %38 = arith.addf %28, %37 : vector<1x64xf32>
    %c0_25 = arith.constant 0 : index
    %c1_26 = arith.constant 1 : index
    %c0_27 = arith.constant 0 : index
    %39 = vector.load %arg1[%c0_25, %c1_26, %c0_27] : memref<1x8x64xf32, #tpu.memory_space<vmem>>, vector<1x1x64xf32>
    %40 = vector.shape_cast %39 : vector<1x1x64xf32> to vector<1x64xf32>
    %41 = arith.subf %40, %26 : vector<1x64xf32>
    %42 = math.exp %41 : vector<1x64xf32>
    %43 = arith.addf %33, %42 : vector<1x64xf32>
    %c1_i32 = arith.constant 1 : i32
    %44 = vector.broadcast %c1_i32 : i32 to vector<1x64xi32>
    %45 = arith.cmpi eq, %1, %44 : vector<1x64xi32>
    %cst_28 = arith.constant 0.000000e+00 : f32
    %46 = vector.broadcast %cst_28 : f32 to vector<1x64xf32>
    %47 = arith.select %45, %40, %46 : vector<1x64xi1>, vector<1x64xf32>
    %48 = arith.addf %38, %47 : vector<1x64xf32>
    %c0_29 = arith.constant 0 : index
    %c2_30 = arith.constant 2 : index
    %c0_31 = arith.constant 0 : index
    %49 = vector.load %arg1[%c0_29, %c2_30, %c0_31] : memref<1x8x64xf32, #tpu.memory_space<vmem>>, vector<1x1x64xf32>
    %50 = vector.shape_cast %49 : vector<1x1x64xf32> to vector<1x64xf32>
    %51 = arith.subf %50, %26 : vector<1x64xf32>
    %52 = math.exp %51 : vector<1x64xf32>
    %53 = arith.addf %43, %52 : vector<1x64xf32>
    %c2_i32 = arith.constant 2 : i32
    %54 = vector.broadcast %c2_i32 : i32 to vector<1x64xi32>
    %55 = arith.cmpi eq, %1, %54 : vector<1x64xi32>
    %cst_32 = arith.constant 0.000000e+00 : f32
    %56 = vector.broadcast %cst_32 : f32 to vector<1x64xf32>
    %57 = arith.select %55, %50, %56 : vector<1x64xi1>, vector<1x64xf32>
    %58 = arith.addf %48, %57 : vector<1x64xf32>
    %c0_33 = arith.constant 0 : index
    %c3_34 = arith.constant 3 : index
    %c0_35 = arith.constant 0 : index
    %59 = vector.load %arg1[%c0_33, %c3_34, %c0_35] : memref<1x8x64xf32, #tpu.memory_space<vmem>>, vector<1x1x64xf32>
    %60 = vector.shape_cast %59 : vector<1x1x64xf32> to vector<1x64xf32>
    %61 = arith.subf %60, %26 : vector<1x64xf32>
    %62 = math.exp %61 : vector<1x64xf32>
    %63 = arith.addf %53, %62 : vector<1x64xf32>
    %c3_i32 = arith.constant 3 : i32
    %64 = vector.broadcast %c3_i32 : i32 to vector<1x64xi32>
    %65 = arith.cmpi eq, %1, %64 : vector<1x64xi32>
    %cst_36 = arith.constant 0.000000e+00 : f32
    %66 = vector.broadcast %cst_36 : f32 to vector<1x64xf32>
    %67 = arith.select %65, %60, %66 : vector<1x64xi1>, vector<1x64xf32>
    %68 = arith.addf %58, %67 : vector<1x64xf32>
    %c0_37 = arith.constant 0 : index
    %c4_38 = arith.constant 4 : index
    %c0_39 = arith.constant 0 : index
    %69 = vector.load %arg1[%c0_37, %c4_38, %c0_39] : memref<1x8x64xf32, #tpu.memory_space<vmem>>, vector<1x1x64xf32>
    %70 = vector.shape_cast %69 : vector<1x1x64xf32> to vector<1x64xf32>
    %71 = arith.subf %70, %26 : vector<1x64xf32>
    %72 = math.exp %71 : vector<1x64xf32>
    %73 = arith.addf %63, %72 : vector<1x64xf32>
    %c4_i32 = arith.constant 4 : i32
    %74 = vector.broadcast %c4_i32 : i32 to vector<1x64xi32>
    %75 = arith.cmpi eq, %1, %74 : vector<1x64xi32>
    %cst_40 = arith.constant 0.000000e+00 : f32
    %76 = vector.broadcast %cst_40 : f32 to vector<1x64xf32>
    %77 = arith.select %75, %70, %76 : vector<1x64xi1>, vector<1x64xf32>
    %78 = arith.addf %68, %77 : vector<1x64xf32>
    %c0_41 = arith.constant 0 : index
    %c5_42 = arith.constant 5 : index
    %c0_43 = arith.constant 0 : index
    %79 = vector.load %arg1[%c0_41, %c5_42, %c0_43] : memref<1x8x64xf32, #tpu.memory_space<vmem>>, vector<1x1x64xf32>
    %80 = vector.shape_cast %79 : vector<1x1x64xf32> to vector<1x64xf32>
    %81 = arith.subf %80, %26 : vector<1x64xf32>
    %82 = math.exp %81 : vector<1x64xf32>
    %83 = arith.addf %73, %82 : vector<1x64xf32>
    %c5_i32 = arith.constant 5 : i32
    %84 = vector.broadcast %c5_i32 : i32 to vector<1x64xi32>
    %85 = arith.cmpi eq, %1, %84 : vector<1x64xi32>
    %cst_44 = arith.constant 0.000000e+00 : f32
    %86 = vector.broadcast %cst_44 : f32 to vector<1x64xf32>
    %87 = arith.select %85, %80, %86 : vector<1x64xi1>, vector<1x64xf32>
    %88 = arith.addf %78, %87 : vector<1x64xf32>
    %c0_45 = arith.constant 0 : index
    %c6_46 = arith.constant 6 : index
    %c0_47 = arith.constant 0 : index
    %89 = vector.load %arg1[%c0_45, %c6_46, %c0_47] : memref<1x8x64xf32, #tpu.memory_space<vmem>>, vector<1x1x64xf32>
    %90 = vector.shape_cast %89 : vector<1x1x64xf32> to vector<1x64xf32>
    %91 = arith.subf %90, %26 : vector<1x64xf32>
    %92 = math.exp %91 : vector<1x64xf32>
    %93 = arith.addf %83, %92 : vector<1x64xf32>
    %c6_i32 = arith.constant 6 : i32
    %94 = vector.broadcast %c6_i32 : i32 to vector<1x64xi32>
    %95 = arith.cmpi eq, %1, %94 : vector<1x64xi32>
    %cst_48 = arith.constant 0.000000e+00 : f32
    %96 = vector.broadcast %cst_48 : f32 to vector<1x64xf32>
    %97 = arith.select %95, %90, %96 : vector<1x64xi1>, vector<1x64xf32>
    %98 = arith.addf %88, %97 : vector<1x64xf32>
    %c0_49 = arith.constant 0 : index
    %c7_50 = arith.constant 7 : index
    %c0_51 = arith.constant 0 : index
    %99 = vector.load %arg1[%c0_49, %c7_50, %c0_51] : memref<1x8x64xf32, #tpu.memory_space<vmem>>, vector<1x1x64xf32>
    %100 = vector.shape_cast %99 : vector<1x1x64xf32> to vector<1x64xf32>
    %101 = arith.subf %100, %26 : vector<1x64xf32>
    %102 = math.exp %101 : vector<1x64xf32>
    %103 = arith.addf %93, %102 : vector<1x64xf32>
    %c7_i32 = arith.constant 7 : i32
    %104 = vector.broadcast %c7_i32 : i32 to vector<1x64xi32>
    %105 = arith.cmpi eq, %1, %104 : vector<1x64xi32>
    %cst_52 = arith.constant 0.000000e+00 : f32
    %106 = vector.broadcast %cst_52 : f32 to vector<1x64xf32>
    %107 = arith.select %105, %100, %106 : vector<1x64xi1>, vector<1x64xf32>
    %108 = arith.addf %98, %107 : vector<1x64xf32>
    %109 = math.log %103 : vector<1x64xf32>
    %110 = arith.addf %26, %109 : vector<1x64xf32>
    %111 = arith.subf %110, %5 : vector<1x64xf32>
    %112 = arith.subf %110, %108 : vector<1x64xf32>
    %113 = arith.extui %3 : vector<1x64xi1> to vector<1x64xi32>
    %114 = vector.shape_cast %113 : vector<1x64xi32> to vector<1x1x64xi32>
    %cst_53 = arith.constant dense<0> : vector<1xi32>
    %115 = vector.multi_reduction <add>, %114, %cst_53 [1, 2] : vector<1x1x64xi32> to vector<1xi32>
    %116 = vector.shape_cast %115 : vector<1xi32> to vector<1x1x1xi32>
    %117 = vector.extract %116[0, 0, 0] : i32 from vector<1x1x1xi32>
    %c3_i32_54 = arith.constant 3 : i32
    %118 = arith.muli %117, %c3_i32_54 : i32
    %119 = tpu.bitcast %111 : vector<1x64xf32> -> vector<1x64xi32>
    %c1_i32_55 = arith.constant 1 : i32
    %120 = vector.broadcast %c1_i32_55 : i32 to vector<1x64xi32>
    %121 = arith.addi %119, %120 : vector<1x64xi32>
    %c0_i32_56 = arith.constant 0 : i32
    %122 = vector.broadcast %c0_i32_56 : i32 to vector<1x64xi32>
    %123 = arith.select %3, %122, %121 : vector<1x64xi1>, vector<1x64xi32>
    %c0_i32_57 = arith.constant 0 : i32
    %c1073741824_i32 = arith.constant 1073741824 : i32
    %124 = arith.addi %c0_i32_57, %c1073741824_i32 : i32
    %125 = vector.broadcast %124 : i32 to vector<1x64xi32>
    %126 = arith.cmpi sge, %123, %125 : vector<1x64xi32>
    %127 = arith.extui %126 : vector<1x64xi1> to vector<1x64xi32>
    %128 = vector.shape_cast %127 : vector<1x64xi32> to vector<1x1x64xi32>
    %cst_58 = arith.constant dense<0> : vector<1xi32>
    %129 = vector.multi_reduction <add>, %128, %cst_58 [1, 2] : vector<1x1x64xi32> to vector<1xi32>
    %130 = vector.shape_cast %129 : vector<1xi32> to vector<1x1x1xi32>
    %131 = vector.extract %130[0, 0, 0] : i32 from vector<1x1x1xi32>
    %132 = arith.cmpi sge, %131, %118 : i32
    %c0_i32_59 = arith.constant 0 : i32
    %133 = arith.select %132, %124, %c0_i32_59 : i32
    %c536870912_i32 = arith.constant 536870912 : i32
    %134 = arith.addi %133, %c536870912_i32 : i32
    %135 = vector.broadcast %134 : i32 to vector<1x64xi32>
    %136 = arith.cmpi sge, %123, %135 : vector<1x64xi32>
    %137 = arith.extui %136 : vector<1x64xi1> to vector<1x64xi32>
    %138 = vector.shape_cast %137 : vector<1x64xi32> to vector<1x1x64xi32>
    %cst_60 = arith.constant dense<0> : vector<1xi32>
    %139 = vector.multi_reduction <add>, %138, %cst_60 [1, 2] : vector<1x1x64xi32> to vector<1xi32>
    %140 = vector.shape_cast %139 : vector<1xi32> to vector<1x1x1xi32>
    %141 = vector.extract %140[0, 0, 0] : i32 from vector<1x1x1xi32>
    %142 = arith.cmpi sge, %141, %118 : i32
    %143 = arith.select %142, %134, %133 : i32
    %c268435456_i32 = arith.constant 268435456 : i32
    %144 = arith.addi %143, %c268435456_i32 : i32
    %145 = vector.broadcast %144 : i32 to vector<1x64xi32>
    %146 = arith.cmpi sge, %123, %145 : vector<1x64xi32>
    %147 = arith.extui %146 : vector<1x64xi1> to vector<1x64xi32>
    %148 = vector.shape_cast %147 : vector<1x64xi32> to vector<1x1x64xi32>
    %cst_61 = arith.constant dense<0> : vector<1xi32>
    %149 = vector.multi_reduction <add>, %148, %cst_61 [1, 2] : vector<1x1x64xi32> to vector<1xi32>
    %150 = vector.shape_cast %149 : vector<1xi32> to vector<1x1x1xi32>
    %151 = vector.extract %150[0, 0, 0] : i32 from vector<1x1x1xi32>
    %152 = arith.cmpi sge, %151, %118 : i32
    %153 = arith.select %152, %144, %143 : i32
    %c134217728_i32 = arith.constant 134217728 : i32
    %154 = arith.addi %153, %c134217728_i32 : i32
    %155 = vector.broadcast %154 : i32 to vector<1x64xi32>
    %156 = arith.cmpi sge, %123, %155 : vector<1x64xi32>
    %157 = arith.extui %156 : vector<1x64xi1> to vector<1x64xi32>
    %158 = vector.shape_cast %157 : vector<1x64xi32> to vector<1x1x64xi32>
    %cst_62 = arith.constant dense<0> : vector<1xi32>
    %159 = vector.multi_reduction <add>, %158, %cst_62 [1, 2] : vector<1x1x64xi32> to vector<1xi32>
    %160 = vector.shape_cast %159 : vector<1xi32> to vector<1x1x1xi32>
    %161 = vector.extract %160[0, 0, 0] : i32 from vector<1x1x1xi32>
    %162 = arith.cmpi sge, %161, %118 : i32
    %163 = arith.select %162, %154, %153 : i32
    %c67108864_i32 = arith.constant 67108864 : i32
    %164 = arith.addi %163, %c67108864_i32 : i32
    %165 = vector.broadcast %164 : i32 to vector<1x64xi32>
    %166 = arith.cmpi sge, %123, %165 : vector<1x64xi32>
    %167 = arith.extui %166 : vector<1x64xi1> to vector<1x64xi32>
    %168 = vector.shape_cast %167 : vector<1x64xi32> to vector<1x1x64xi32>
    %cst_63 = arith.constant dense<0> : vector<1xi32>
    %169 = vector.multi_reduction <add>, %168, %cst_63 [1, 2] : vector<1x1x64xi32> to vector<1xi32>
    %170 = vector.shape_cast %169 : vector<1xi32> to vector<1x1x1xi32>
    %171 = vector.extract %170[0, 0, 0] : i32 from vector<1x1x1xi32>
    %172 = arith.cmpi sge, %171, %118 : i32
    %173 = arith.select %172, %164, %163 : i32
    %c33554432_i32 = arith.constant 33554432 : i32
    %174 = arith.addi %173, %c33554432_i32 : i32
    %175 = vector.broadcast %174 : i32 to vector<1x64xi32>
    %176 = arith.cmpi sge, %123, %175 : vector<1x64xi32>
    %177 = arith.extui %176 : vector<1x64xi1> to vector<1x64xi32>
    %178 = vector.shape_cast %177 : vector<1x64xi32> to vector<1x1x64xi32>
    %cst_64 = arith.constant dense<0> : vector<1xi32>
    %179 = vector.multi_reduction <add>, %178, %cst_64 [1, 2] : vector<1x1x64xi32> to vector<1xi32>
    %180 = vector.shape_cast %179 : vector<1xi32> to vector<1x1x1xi32>
    %181 = vector.extract %180[0, 0, 0] : i32 from vector<1x1x1xi32>
    %182 = arith.cmpi sge, %181, %118 : i32
    %183 = arith.select %182, %174, %173 : i32
    %c16777216_i32 = arith.constant 16777216 : i32
    %184 = arith.addi %183, %c16777216_i32 : i32
    %185 = vector.broadcast %184 : i32 to vector<1x64xi32>
    %186 = arith.cmpi sge, %123, %185 : vector<1x64xi32>
    %187 = arith.extui %186 : vector<1x64xi1> to vector<1x64xi32>
    %188 = vector.shape_cast %187 : vector<1x64xi32> to vector<1x1x64xi32>
    %cst_65 = arith.constant dense<0> : vector<1xi32>
    %189 = vector.multi_reduction <add>, %188, %cst_65 [1, 2] : vector<1x1x64xi32> to vector<1xi32>
    %190 = vector.shape_cast %189 : vector<1xi32> to vector<1x1x1xi32>
    %191 = vector.extract %190[0, 0, 0] : i32 from vector<1x1x1xi32>
    %192 = arith.cmpi sge, %191, %118 : i32
    %193 = arith.select %192, %184, %183 : i32
    %c8388608_i32 = arith.constant 8388608 : i32
    %194 = arith.addi %193, %c8388608_i32 : i32
    %195 = vector.broadcast %194 : i32 to vector<1x64xi32>
    %196 = arith.cmpi sge, %123, %195 : vector<1x64xi32>
    %197 = arith.extui %196 : vector<1x64xi1> to vector<1x64xi32>
    %198 = vector.shape_cast %197 : vector<1x64xi32> to vector<1x1x64xi32>
    %cst_66 = arith.constant dense<0> : vector<1xi32>
    %199 = vector.multi_reduction <add>, %198, %cst_66 [1, 2] : vector<1x1x64xi32> to vector<1xi32>
    %200 = vector.shape_cast %199 : vector<1xi32> to vector<1x1x1xi32>
    %201 = vector.extract %200[0, 0, 0] : i32 from vector<1x1x1xi32>
    %202 = arith.cmpi sge, %201, %118 : i32
    %203 = arith.select %202, %194, %193 : i32
    %c4194304_i32 = arith.constant 4194304 : i32
    %204 = arith.addi %203, %c4194304_i32 : i32
    %205 = vector.broadcast %204 : i32 to vector<1x64xi32>
    %206 = arith.cmpi sge, %123, %205 : vector<1x64xi32>
    %207 = arith.extui %206 : vector<1x64xi1> to vector<1x64xi32>
    %208 = vector.shape_cast %207 : vector<1x64xi32> to vector<1x1x64xi32>
    %cst_67 = arith.constant dense<0> : vector<1xi32>
    %209 = vector.multi_reduction <add>, %208, %cst_67 [1, 2] : vector<1x1x64xi32> to vector<1xi32>
    %210 = vector.shape_cast %209 : vector<1xi32> to vector<1x1x1xi32>
    %211 = vector.extract %210[0, 0, 0] : i32 from vector<1x1x1xi32>
    %212 = arith.cmpi sge, %211, %118 : i32
    %213 = arith.select %212, %204, %203 : i32
    %c2097152_i32 = arith.constant 2097152 : i32
    %214 = arith.addi %213, %c2097152_i32 : i32
    %215 = vector.broadcast %214 : i32 to vector<1x64xi32>
    %216 = arith.cmpi sge, %123, %215 : vector<1x64xi32>
    %217 = arith.extui %216 : vector<1x64xi1> to vector<1x64xi32>
    %218 = vector.shape_cast %217 : vector<1x64xi32> to vector<1x1x64xi32>
    %cst_68 = arith.constant dense<0> : vector<1xi32>
    %219 = vector.multi_reduction <add>, %218, %cst_68 [1, 2] : vector<1x1x64xi32> to vector<1xi32>
    %220 = vector.shape_cast %219 : vector<1xi32> to vector<1x1x1xi32>
    %221 = vector.extract %220[0, 0, 0] : i32 from vector<1x1x1xi32>
    %222 = arith.cmpi sge, %221, %118 : i32
    %223 = arith.select %222, %214, %213 : i32
    %c1048576_i32 = arith.constant 1048576 : i32
    %224 = arith.addi %223, %c1048576_i32 : i32
    %225 = vector.broadcast %224 : i32 to vector<1x64xi32>
    %226 = arith.cmpi sge, %123, %225 : vector<1x64xi32>
    %227 = arith.extui %226 : vector<1x64xi1> to vector<1x64xi32>
    %228 = vector.shape_cast %227 : vector<1x64xi32> to vector<1x1x64xi32>
    %cst_69 = arith.constant dense<0> : vector<1xi32>
    %229 = vector.multi_reduction <add>, %228, %cst_69 [1, 2] : vector<1x1x64xi32> to vector<1xi32>
    %230 = vector.shape_cast %229 : vector<1xi32> to vector<1x1x1xi32>
    %231 = vector.extract %230[0, 0, 0] : i32 from vector<1x1x1xi32>
    %232 = arith.cmpi sge, %231, %118 : i32
    %233 = arith.select %232, %224, %223 : i32
    %c524288_i32 = arith.constant 524288 : i32
    %234 = arith.addi %233, %c524288_i32 : i32
    %235 = vector.broadcast %234 : i32 to vector<1x64xi32>
    %236 = arith.cmpi sge, %123, %235 : vector<1x64xi32>
    %237 = arith.extui %236 : vector<1x64xi1> to vector<1x64xi32>
    %238 = vector.shape_cast %237 : vector<1x64xi32> to vector<1x1x64xi32>
    %cst_70 = arith.constant dense<0> : vector<1xi32>
    %239 = vector.multi_reduction <add>, %238, %cst_70 [1, 2] : vector<1x1x64xi32> to vector<1xi32>
    %240 = vector.shape_cast %239 : vector<1xi32> to vector<1x1x1xi32>
    %241 = vector.extract %240[0, 0, 0] : i32 from vector<1x1x1xi32>
    %242 = arith.cmpi sge, %241, %118 : i32
    %243 = arith.select %242, %234, %233 : i32
    %c262144_i32 = arith.constant 262144 : i32
    %244 = arith.addi %243, %c262144_i32 : i32
    %245 = vector.broadcast %244 : i32 to vector<1x64xi32>
    %246 = arith.cmpi sge, %123, %245 : vector<1x64xi32>
    %247 = arith.extui %246 : vector<1x64xi1> to vector<1x64xi32>
    %248 = vector.shape_cast %247 : vector<1x64xi32> to vector<1x1x64xi32>
    %cst_71 = arith.constant dense<0> : vector<1xi32>
    %249 = vector.multi_reduction <add>, %248, %cst_71 [1, 2] : vector<1x1x64xi32> to vector<1xi32>
    %250 = vector.shape_cast %249 : vector<1xi32> to vector<1x1x1xi32>
    %251 = vector.extract %250[0, 0, 0] : i32 from vector<1x1x1xi32>
    %252 = arith.cmpi sge, %251, %118 : i32
    %253 = arith.select %252, %244, %243 : i32
    %c131072_i32 = arith.constant 131072 : i32
    %254 = arith.addi %253, %c131072_i32 : i32
    %255 = vector.broadcast %254 : i32 to vector<1x64xi32>
    %256 = arith.cmpi sge, %123, %255 : vector<1x64xi32>
    %257 = arith.extui %256 : vector<1x64xi1> to vector<1x64xi32>
    %258 = vector.shape_cast %257 : vector<1x64xi32> to vector<1x1x64xi32>
    %cst_72 = arith.constant dense<0> : vector<1xi32>
    %259 = vector.multi_reduction <add>, %258, %cst_72 [1, 2] : vector<1x1x64xi32> to vector<1xi32>
    %260 = vector.shape_cast %259 : vector<1xi32> to vector<1x1x1xi32>
    %261 = vector.extract %260[0, 0, 0] : i32 from vector<1x1x1xi32>
    %262 = arith.cmpi sge, %261, %118 : i32
    %263 = arith.select %262, %254, %253 : i32
    %c65536_i32 = arith.constant 65536 : i32
    %264 = arith.addi %263, %c65536_i32 : i32
    %265 = vector.broadcast %264 : i32 to vector<1x64xi32>
    %266 = arith.cmpi sge, %123, %265 : vector<1x64xi32>
    %267 = arith.extui %266 : vector<1x64xi1> to vector<1x64xi32>
    %268 = vector.shape_cast %267 : vector<1x64xi32> to vector<1x1x64xi32>
    %cst_73 = arith.constant dense<0> : vector<1xi32>
    %269 = vector.multi_reduction <add>, %268, %cst_73 [1, 2] : vector<1x1x64xi32> to vector<1xi32>
    %270 = vector.shape_cast %269 : vector<1xi32> to vector<1x1x1xi32>
    %271 = vector.extract %270[0, 0, 0] : i32 from vector<1x1x1xi32>
    %272 = arith.cmpi sge, %271, %118 : i32
    %273 = arith.select %272, %264, %263 : i32
    %c32768_i32 = arith.constant 32768 : i32
    %274 = arith.addi %273, %c32768_i32 : i32
    %275 = vector.broadcast %274 : i32 to vector<1x64xi32>
    %276 = arith.cmpi sge, %123, %275 : vector<1x64xi32>
    %277 = arith.extui %276 : vector<1x64xi1> to vector<1x64xi32>
    %278 = vector.shape_cast %277 : vector<1x64xi32> to vector<1x1x64xi32>
    %cst_74 = arith.constant dense<0> : vector<1xi32>
    %279 = vector.multi_reduction <add>, %278, %cst_74 [1, 2] : vector<1x1x64xi32> to vector<1xi32>
    %280 = vector.shape_cast %279 : vector<1xi32> to vector<1x1x1xi32>
    %281 = vector.extract %280[0, 0, 0] : i32 from vector<1x1x1xi32>
    %282 = arith.cmpi sge, %281, %118 : i32
    %283 = arith.select %282, %274, %273 : i32
    %c16384_i32 = arith.constant 16384 : i32
    %284 = arith.addi %283, %c16384_i32 : i32
    %285 = vector.broadcast %284 : i32 to vector<1x64xi32>
    %286 = arith.cmpi sge, %123, %285 : vector<1x64xi32>
    %287 = arith.extui %286 : vector<1x64xi1> to vector<1x64xi32>
    %288 = vector.shape_cast %287 : vector<1x64xi32> to vector<1x1x64xi32>
    %cst_75 = arith.constant dense<0> : vector<1xi32>
    %289 = vector.multi_reduction <add>, %288, %cst_75 [1, 2] : vector<1x1x64xi32> to vector<1xi32>
    %290 = vector.shape_cast %289 : vector<1xi32> to vector<1x1x1xi32>
    %291 = vector.extract %290[0, 0, 0] : i32 from vector<1x1x1xi32>
    %292 = arith.cmpi sge, %291, %118 : i32
    %293 = arith.select %292, %284, %283 : i32
    %c8192_i32 = arith.constant 8192 : i32
    %294 = arith.addi %293, %c8192_i32 : i32
    %295 = vector.broadcast %294 : i32 to vector<1x64xi32>
    %296 = arith.cmpi sge, %123, %295 : vector<1x64xi32>
    %297 = arith.extui %296 : vector<1x64xi1> to vector<1x64xi32>
    %298 = vector.shape_cast %297 : vector<1x64xi32> to vector<1x1x64xi32>
    %cst_76 = arith.constant dense<0> : vector<1xi32>
    %299 = vector.multi_reduction <add>, %298, %cst_76 [1, 2] : vector<1x1x64xi32> to vector<1xi32>
    %300 = vector.shape_cast %299 : vector<1xi32> to vector<1x1x1xi32>
    %301 = vector.extract %300[0, 0, 0] : i32 from vector<1x1x1xi32>
    %302 = arith.cmpi sge, %301, %118 : i32
    %303 = arith.select %302, %294, %293 : i32
    %c4096_i32 = arith.constant 4096 : i32
    %304 = arith.addi %303, %c4096_i32 : i32
    %305 = vector.broadcast %304 : i32 to vector<1x64xi32>
    %306 = arith.cmpi sge, %123, %305 : vector<1x64xi32>
    %307 = arith.extui %306 : vector<1x64xi1> to vector<1x64xi32>
    %308 = vector.shape_cast %307 : vector<1x64xi32> to vector<1x1x64xi32>
    %cst_77 = arith.constant dense<0> : vector<1xi32>
    %309 = vector.multi_reduction <add>, %308, %cst_77 [1, 2] : vector<1x1x64xi32> to vector<1xi32>
    %310 = vector.shape_cast %309 : vector<1xi32> to vector<1x1x1xi32>
    %311 = vector.extract %310[0, 0, 0] : i32 from vector<1x1x1xi32>
    %312 = arith.cmpi sge, %311, %118 : i32
    %313 = arith.select %312, %304, %303 : i32
    %c2048_i32 = arith.constant 2048 : i32
    %314 = arith.addi %313, %c2048_i32 : i32
    %315 = vector.broadcast %314 : i32 to vector<1x64xi32>
    %316 = arith.cmpi sge, %123, %315 : vector<1x64xi32>
    %317 = arith.extui %316 : vector<1x64xi1> to vector<1x64xi32>
    %318 = vector.shape_cast %317 : vector<1x64xi32> to vector<1x1x64xi32>
    %cst_78 = arith.constant dense<0> : vector<1xi32>
    %319 = vector.multi_reduction <add>, %318, %cst_78 [1, 2] : vector<1x1x64xi32> to vector<1xi32>
    %320 = vector.shape_cast %319 : vector<1xi32> to vector<1x1x1xi32>
    %321 = vector.extract %320[0, 0, 0] : i32 from vector<1x1x1xi32>
    %322 = arith.cmpi sge, %321, %118 : i32
    %323 = arith.select %322, %314, %313 : i32
    %c1024_i32 = arith.constant 1024 : i32
    %324 = arith.addi %323, %c1024_i32 : i32
    %325 = vector.broadcast %324 : i32 to vector<1x64xi32>
    %326 = arith.cmpi sge, %123, %325 : vector<1x64xi32>
    %327 = arith.extui %326 : vector<1x64xi1> to vector<1x64xi32>
    %328 = vector.shape_cast %327 : vector<1x64xi32> to vector<1x1x64xi32>
    %cst_79 = arith.constant dense<0> : vector<1xi32>
    %329 = vector.multi_reduction <add>, %328, %cst_79 [1, 2] : vector<1x1x64xi32> to vector<1xi32>
    %330 = vector.shape_cast %329 : vector<1xi32> to vector<1x1x1xi32>
    %331 = vector.extract %330[0, 0, 0] : i32 from vector<1x1x1xi32>
    %332 = arith.cmpi sge, %331, %118 : i32
    %333 = arith.select %332, %324, %323 : i32
    %c512_i32 = arith.constant 512 : i32
    %334 = arith.addi %333, %c512_i32 : i32
    %335 = vector.broadcast %334 : i32 to vector<1x64xi32>
    %336 = arith.cmpi sge, %123, %335 : vector<1x64xi32>
    %337 = arith.extui %336 : vector<1x64xi1> to vector<1x64xi32>
    %338 = vector.shape_cast %337 : vector<1x64xi32> to vector<1x1x64xi32>
    %cst_80 = arith.constant dense<0> : vector<1xi32>
    %339 = vector.multi_reduction <add>, %338, %cst_80 [1, 2] : vector<1x1x64xi32> to vector<1xi32>
    %340 = vector.shape_cast %339 : vector<1xi32> to vector<1x1x1xi32>
    %341 = vector.extract %340[0, 0, 0] : i32 from vector<1x1x1xi32>
    %342 = arith.cmpi sge, %341, %118 : i32
    %343 = arith.select %342, %334, %333 : i32
    %c256_i32 = arith.constant 256 : i32
    %344 = arith.addi %343, %c256_i32 : i32
    %345 = vector.broadcast %344 : i32 to vector<1x64xi32>
    %346 = arith.cmpi sge, %123, %345 : vector<1x64xi32>
    %347 = arith.extui %346 : vector<1x64xi1> to vector<1x64xi32>
    %348 = vector.shape_cast %347 : vector<1x64xi32> to vector<1x1x64xi32>
    %cst_81 = arith.constant dense<0> : vector<1xi32>
    %349 = vector.multi_reduction <add>, %348, %cst_81 [1, 2] : vector<1x1x64xi32> to vector<1xi32>
    %350 = vector.shape_cast %349 : vector<1xi32> to vector<1x1x1xi32>
    %351 = vector.extract %350[0, 0, 0] : i32 from vector<1x1x1xi32>
    %352 = arith.cmpi sge, %351, %118 : i32
    %353 = arith.select %352, %344, %343 : i32
    %c128_i32 = arith.constant 128 : i32
    %354 = arith.addi %353, %c128_i32 : i32
    %355 = vector.broadcast %354 : i32 to vector<1x64xi32>
    %356 = arith.cmpi sge, %123, %355 : vector<1x64xi32>
    %357 = arith.extui %356 : vector<1x64xi1> to vector<1x64xi32>
    %358 = vector.shape_cast %357 : vector<1x64xi32> to vector<1x1x64xi32>
    %cst_82 = arith.constant dense<0> : vector<1xi32>
    %359 = vector.multi_reduction <add>, %358, %cst_82 [1, 2] : vector<1x1x64xi32> to vector<1xi32>
    %360 = vector.shape_cast %359 : vector<1xi32> to vector<1x1x1xi32>
    %361 = vector.extract %360[0, 0, 0] : i32 from vector<1x1x1xi32>
    %362 = arith.cmpi sge, %361, %118 : i32
    %363 = arith.select %362, %354, %353 : i32
    %c64_i32 = arith.constant 64 : i32
    %364 = arith.addi %363, %c64_i32 : i32
    %365 = vector.broadcast %364 : i32 to vector<1x64xi32>
    %366 = arith.cmpi sge, %123, %365 : vector<1x64xi32>
    %367 = arith.extui %366 : vector<1x64xi1> to vector<1x64xi32>
    %368 = vector.shape_cast %367 : vector<1x64xi32> to vector<1x1x64xi32>
    %cst_83 = arith.constant dense<0> : vector<1xi32>
    %369 = vector.multi_reduction <add>, %368, %cst_83 [1, 2] : vector<1x1x64xi32> to vector<1xi32>
    %370 = vector.shape_cast %369 : vector<1xi32> to vector<1x1x1xi32>
    %371 = vector.extract %370[0, 0, 0] : i32 from vector<1x1x1xi32>
    %372 = arith.cmpi sge, %371, %118 : i32
    %373 = arith.select %372, %364, %363 : i32
    %c32_i32 = arith.constant 32 : i32
    %374 = arith.addi %373, %c32_i32 : i32
    %375 = vector.broadcast %374 : i32 to vector<1x64xi32>
    %376 = arith.cmpi sge, %123, %375 : vector<1x64xi32>
    %377 = arith.extui %376 : vector<1x64xi1> to vector<1x64xi32>
    %378 = vector.shape_cast %377 : vector<1x64xi32> to vector<1x1x64xi32>
    %cst_84 = arith.constant dense<0> : vector<1xi32>
    %379 = vector.multi_reduction <add>, %378, %cst_84 [1, 2] : vector<1x1x64xi32> to vector<1xi32>
    %380 = vector.shape_cast %379 : vector<1xi32> to vector<1x1x1xi32>
    %381 = vector.extract %380[0, 0, 0] : i32 from vector<1x1x1xi32>
    %382 = arith.cmpi sge, %381, %118 : i32
    %383 = arith.select %382, %374, %373 : i32
    %c16_i32 = arith.constant 16 : i32
    %384 = arith.addi %383, %c16_i32 : i32
    %385 = vector.broadcast %384 : i32 to vector<1x64xi32>
    %386 = arith.cmpi sge, %123, %385 : vector<1x64xi32>
    %387 = arith.extui %386 : vector<1x64xi1> to vector<1x64xi32>
    %388 = vector.shape_cast %387 : vector<1x64xi32> to vector<1x1x64xi32>
    %cst_85 = arith.constant dense<0> : vector<1xi32>
    %389 = vector.multi_reduction <add>, %388, %cst_85 [1, 2] : vector<1x1x64xi32> to vector<1xi32>
    %390 = vector.shape_cast %389 : vector<1xi32> to vector<1x1x1xi32>
    %391 = vector.extract %390[0, 0, 0] : i32 from vector<1x1x1xi32>
    %392 = arith.cmpi sge, %391, %118 : i32
    %393 = arith.select %392, %384, %383 : i32
    %c8_i32 = arith.constant 8 : i32
    %394 = arith.addi %393, %c8_i32 : i32
    %395 = vector.broadcast %394 : i32 to vector<1x64xi32>
    %396 = arith.cmpi sge, %123, %395 : vector<1x64xi32>
    %397 = arith.extui %396 : vector<1x64xi1> to vector<1x64xi32>
    %398 = vector.shape_cast %397 : vector<1x64xi32> to vector<1x1x64xi32>
    %cst_86 = arith.constant dense<0> : vector<1xi32>
    %399 = vector.multi_reduction <add>, %398, %cst_86 [1, 2] : vector<1x1x64xi32> to vector<1xi32>
    %400 = vector.shape_cast %399 : vector<1xi32> to vector<1x1x1xi32>
    %401 = vector.extract %400[0, 0, 0] : i32 from vector<1x1x1xi32>
    %402 = arith.cmpi sge, %401, %118 : i32
    %403 = arith.select %402, %394, %393 : i32
    %c4_i32_87 = arith.constant 4 : i32
    %404 = arith.addi %403, %c4_i32_87 : i32
    %405 = vector.broadcast %404 : i32 to vector<1x64xi32>
    %406 = arith.cmpi sge, %123, %405 : vector<1x64xi32>
    %407 = arith.extui %406 : vector<1x64xi1> to vector<1x64xi32>
    %408 = vector.shape_cast %407 : vector<1x64xi32> to vector<1x1x64xi32>
    %cst_88 = arith.constant dense<0> : vector<1xi32>
    %409 = vector.multi_reduction <add>, %408, %cst_88 [1, 2] : vector<1x1x64xi32> to vector<1xi32>
    %410 = vector.shape_cast %409 : vector<1xi32> to vector<1x1x1xi32>
    %411 = vector.extract %410[0, 0, 0] : i32 from vector<1x1x1xi32>
    %412 = arith.cmpi sge, %411, %118 : i32
    %413 = arith.select %412, %404, %403 : i32
    %c2_i32_89 = arith.constant 2 : i32
    %414 = arith.addi %413, %c2_i32_89 : i32
    %415 = vector.broadcast %414 : i32 to vector<1x64xi32>
    %416 = arith.cmpi sge, %123, %415 : vector<1x64xi32>
    %417 = arith.extui %416 : vector<1x64xi1> to vector<1x64xi32>
    %418 = vector.shape_cast %417 : vector<1x64xi32> to vector<1x1x64xi32>
    %cst_90 = arith.constant dense<0> : vector<1xi32>
    %419 = vector.multi_reduction <add>, %418, %cst_90 [1, 2] : vector<1x1x64xi32> to vector<1xi32>
    %420 = vector.shape_cast %419 : vector<1xi32> to vector<1x1x1xi32>
    %421 = vector.extract %420[0, 0, 0] : i32 from vector<1x1x1xi32>
    %422 = arith.cmpi sge, %421, %118 : i32
    %423 = arith.select %422, %414, %413 : i32
    %c1_i32_91 = arith.constant 1 : i32
    %424 = arith.addi %423, %c1_i32_91 : i32
    %425 = vector.broadcast %424 : i32 to vector<1x64xi32>
    %426 = arith.cmpi sge, %123, %425 : vector<1x64xi32>
    %427 = arith.extui %426 : vector<1x64xi1> to vector<1x64xi32>
    %428 = vector.shape_cast %427 : vector<1x64xi32> to vector<1x1x64xi32>
    %cst_92 = arith.constant dense<0> : vector<1xi32>
    %429 = vector.multi_reduction <add>, %428, %cst_92 [1, 2] : vector<1x1x64xi32> to vector<1xi32>
    %430 = vector.shape_cast %429 : vector<1xi32> to vector<1x1x1xi32>
    %431 = vector.extract %430[0, 0, 0] : i32 from vector<1x1x1xi32>
    %432 = arith.cmpi sge, %431, %118 : i32
    %433 = arith.select %432, %424, %423 : i32
    %434 = vector.broadcast %433 : i32 to vector<1x64xi32>
    %435 = arith.cmpi sge, %123, %434 : vector<1x64xi32>
    %436 = arith.ori %3, %435 : vector<1x64xi1>
    %cst_93 = arith.constant 0.000000e+00 : f32
    %437 = vector.broadcast %cst_93 : f32 to vector<1x64xf32>
    %438 = arith.select %436, %112, %437 : vector<1x64xi1>, vector<1x64xf32>
    %439 = vector.shape_cast %438 : vector<1x64xf32> to vector<1x1x64xf32>
    %cst_94 = arith.constant dense<0.000000e+00> : vector<1xf32>
    %440 = vector.multi_reduction <add>, %439, %cst_94 [1, 2] : vector<1x1x64xf32> to vector<1xf32>
    %441 = vector.shape_cast %440 : vector<1xf32> to vector<1x1x1xf32>
    %442 = vector.extract %441[0, 0, 0] : f32 from vector<1x1x1xf32>
    %c0_95 = arith.constant 0 : index
    %c0_96 = arith.constant 0 : index
    %c0_97 = arith.constant 0 : index
    %443 = vector.load %arg2[%c0_95, %c0_96, %c0_97] : memref<1x4x64xf32, #tpu.memory_space<vmem>>, vector<1x4x64xf32>
    %444 = vector.shape_cast %443 : vector<1x4x64xf32> to vector<4x64xf32>
    %c0_98 = arith.constant 0 : index
    %c0_99 = arith.constant 0 : index
    %c0_100 = arith.constant 0 : index
    %445 = vector.load %arg3[%c0_98, %c0_99, %c0_100] : memref<1x4x64xf32, #tpu.memory_space<vmem>>, vector<1x4x64xf32>
    %446 = vector.shape_cast %445 : vector<1x4x64xf32> to vector<4x64xf32>
    %447 = arith.subf %444, %446 : vector<4x64xf32>
    %448 = math.absf %447 : vector<4x64xf32>
    %cst_101 = arith.constant 1.000000e+00 : f32
    %449 = vector.broadcast %cst_101 : f32 to vector<4x64xf32>
    %450 = arith.cmpf olt, %448, %449 : vector<4x64xf32>
    %cst_102 = arith.constant 5.000000e-01 : f32
    %451 = vector.broadcast %cst_102 : f32 to vector<4x64xf32>
    %452 = arith.mulf %451, %447 : vector<4x64xf32>
    %453 = arith.mulf %452, %447 : vector<4x64xf32>
    %cst_103 = arith.constant 5.000000e-01 : f32
    %454 = vector.broadcast %cst_103 : f32 to vector<4x64xf32>
    %455 = arith.subf %448, %454 : vector<4x64xf32>
    %456 = arith.select %450, %453, %455 : vector<4x64xi1>, vector<4x64xf32>
    %cst_104 = arith.constant 0.000000e+00 : f32
    %457 = vector.shape_cast %3 : vector<1x64xi1> to vector<1x64xi1>
    %458 = vector.broadcast %457 : vector<1x64xi1> to vector<4x64xi1>
    %459 = vector.broadcast %cst_104 : f32 to vector<4x64xf32>
    %460 = arith.select %458, %456, %459 : vector<4x64xi1>, vector<4x64xf32>
    %461 = vector.shape_cast %460 : vector<4x64xf32> to vector<1x4x64xf32>
    %cst_105 = arith.constant dense<0.000000e+00> : vector<1xf32>
    %462 = vector.multi_reduction <add>, %461, %cst_105 [1, 2] : vector<1x4x64xf32> to vector<1xf32>
    %463 = vector.shape_cast %462 : vector<1xf32> to vector<1x1x1xf32>
    %464 = vector.extract %463[0, 0, 0] : f32 from vector<1x1x1xf32>
    %cst_106 = arith.constant 1.000000e+00 : f32
    %465 = arith.mulf %464, %cst_106 : f32
    %466 = arith.addf %465, %442 : f32
    %cst_107 = arith.constant 0.000000e+00 : f32
    %467 = vector.broadcast %cst_107 : f32 to vector<1x128xf32>
    %468 = vector.broadcast %466 : f32 to vector<1x128xf32>
    %469 = arith.addf %467, %468 : vector<1x128xf32>
    %c0_108 = arith.constant 0 : index
    %c0_109 = arith.constant 0 : index
    %c0_110 = arith.constant 0 : index
    %470 = vector.load %arg5[%c0_108, %c0_109, %c0_110] : memref<1x2x128xf32, #tpu.memory_space<vmem>>, vector<1x1x128xf32>
    %471 = vector.shape_cast %470 : vector<1x1x128xf32> to vector<1x128xf32>
    %472 = vector.shape_cast %469 : vector<1x128xf32> to vector<1x1x128xf32>
    tpu.vector_store %arg5[%c0_108, %c0_109, %c0_110], %472 {strides = array<i32>} : memref<1x2x128xf32, #tpu.memory_space<vmem>>, vector<1x1x128xf32>,
    %cst_111 = arith.constant 0.000000e+00 : f32
    %473 = vector.broadcast %cst_111 : f32 to vector<1x128xf32>
    %474 = arith.sitofp %117 : i32 to f32
    %475 = vector.broadcast %474 : f32 to vector<1x128xf32>
    %476 = arith.addf %473, %475 : vector<1x128xf32>
    %c0_112 = arith.constant 0 : index
    %c1_113 = arith.constant 1 : index
    %c0_114 = arith.constant 0 : index
    %477 = vector.load %arg5[%c0_112, %c1_113, %c0_114] : memref<1x2x128xf32, #tpu.memory_space<vmem>>, vector<1x1x128xf32>
    %478 = vector.shape_cast %477 : vector<1x1x128xf32> to vector<1x128xf32>
    %479 = vector.shape_cast %476 : vector<1x128xf32> to vector<1x1x128xf32>
    tpu.vector_store %arg5[%c0_112, %c1_113, %c0_114], %479 {strides = array<i32>} : memref<1x2x128xf32, #tpu.memory_space<vmem>>, vector<1x1x128xf32>,
    return
  }
  func.func @transform_0(%arg0: i32) -> (i32, i32, i32) {
    %c0_i32 = arith.constant 0 : i32
    %c0_i32_0 = arith.constant 0 : i32
    %c0_i32_1 = arith.constant 0 : i32
    return %arg0, %c0_i32, %c0_i32_0 : i32, i32, i32
  }
  func.func @transform_1(%arg0: i32) -> (i32, i32, i32) {
    %c0_i32 = arith.constant 0 : i32
    %c0_i32_0 = arith.constant 0 : i32
    %c0_i32_1 = arith.constant 0 : i32
    return %arg0, %c0_i32, %c0_i32_0 : i32, i32, i32
  }
  func.func @transform_2(%arg0: i32) -> (i32, i32, i32) {
    %c0_i32 = arith.constant 0 : i32
    %c0_i32_0 = arith.constant 0 : i32
    %c0_i32_1 = arith.constant 0 : i32
    return %arg0, %c0_i32, %c0_i32_0 : i32, i32, i32
  }
  func.func @transform_3(%arg0: i32) -> (i32, i32, i32) {
    %c0_i32 = arith.constant 0 : i32
    %c0_i32_0 = arith.constant 0 : i32
    %c0_i32_1 = arith.constant 0 : i32
    return %arg0, %c0_i32, %c0_i32_0 : i32, i32, i32
  }
  func.func @transform_4(%arg0: i32) -> (i32, i32, i32) {
    %c0_i32 = arith.constant 0 : i32
    %c0_i32_0 = arith.constant 0 : i32
    %c0_i32_1 = arith.constant 0 : i32
    return %arg0, %c0_i32, %c0_i32_0 : i32, i32, i32
  }
}

</mosaic_0001>

<llo_original>
// kernel: tpu_custom_call.1
$region0: #{tpu_custom_call.1}
  #allocation0 [shape = 'u32[]', space=smem, size = 0x4, offset = 0x4, fixed_abs, tag = 'smem constant byte address 0x4 - core index']
  #allocation1 [shape = 'u32[144,128]{1,0:T(1,128)}', space=vmem, size = 0x12000, scoped, tag = 'internal scratch']
  %s0 = inlined_call_operand.hbm [shape: f32[2,8,64], index: 0, kind: input, shape index: {}]
  %s1 = inlined_call_operand.hbm [shape: f32[2,4,64], index: 1, kind: input, shape index: {}]
  %s2 = inlined_call_operand.hbm [shape: f32[2,4,64], index: 2, kind: input, shape index: {}]
  %s3 = inlined_call_operand.vmem [shape: s32[2,1,64], index: 3, kind: input, shape index: {}]
  %s4 = inlined_call_operand.hbm [shape: f32[2,2,128], index: 4, kind: output, shape index: {}]
  %s5 = sld [smem:[#allocation0]]
  $region61: #{tpu_custom_call.1} parent=0
    _
  %s7 = ssub.s32 1, %s5
  %s8 = scalar_select 0, %s7, %s5
  $region1: #{tpu_custom_call.1} parent=0
    #allocation2 [shape = 'u8[8192]{0}', space=vmem, size = 0x2000, scoped, tag = 'input window, operand 0']
    #allocation3 [shape = 's32[2]{0}', space=sflag, size = 0x8, scoped, tag = 'scoped memory for tpu_custom_call.1']
    #allocation4 [shape = 's32[2]{0}', space=sflag, size = 0x8, scoped, tag = 'scoped memory for tpu_custom_call.1']
    #allocation5 [shape = 'u8[4096]{0}', space=vmem, size = 0x1000, scoped, tag = 'input window, operand 1']
    #allocation6 [shape = 's32[2]{0}', space=sflag, size = 0x8, scoped, tag = 'scoped memory for tpu_custom_call.1']
    #allocation7 [shape = 'u8[4096]{0}', space=vmem, size = 0x1000, scoped, tag = 'input window, operand 2']
    #allocation8 [shape = 'u8[2048]{0}', space=vmem, size = 0x800, scoped, tag = 'output window, operand 0']
    %9 = vsyncpa [#allocation3], 0
    %s10 = scalar_lea.sflag [#allocation3], 1
    %11 = vsyncpa %s10, 0
    %12 = vsyncpa [#allocation6], 0
    %s13 = scalar_lea.sflag [#allocation6], 1
    %14 = vsyncpa %s13, 0
    %15 = vsyncpa [#allocation4], 0
    %s16 = scalar_lea.sflag [#allocation4], 1
    %17 = vsyncpa %s16, 0
    loop: start=0, step=1, limit=4
    $region2: #{tpu_custom_call.1} parent=1 // loop_pre_header
      _
    $region3: #{tpu_custom_call.1} parent=1 // loop_header
      %s19 = sphi 0, %s23
      %p20 = scmp.ge.s32.totalorder %s19, 4
      %s29 = sphi 0, %s31
      %s32 = sphi 0, %s29
      %s33 = sphi 0, %s32
      %s49 = sphi 0, %s33
      %s55 = sphi 0, %s57
      %s58 = sphi 0, %s55
      %s59 = sphi 0, %s58
      %s75 = sphi 0, %s59
      %s81 = sphi 0, %s83
      %s84 = sphi 0, %s81
      %s85 = sphi 0, %s84
      %s101 = sphi 0, %s85
      %s107 = sphi 0, %s109
      %s110 = sphi 0, %s107
      %s111 = sphi 0, %s110
      %s127 = sphi 0, %s111
      %s133 = sphi 0, %s135
      %s136 = sphi 0, %s133
      %s137 = sphi 0, %s136
      %s153 = sphi 0, %s137
    $region4: #{tpu_custom_call.1} parent=1 // loop_header_branch
      %22 = sbr.rel (%p20) target = $region8
    $region5: #{tpu_custom_call.1} parent=1 // loop_body
      %s24 = ssub.s32 %s19, 1
      %s25 = ssub.s32 %s19, 2
      %s26 = sadd.s32 %s19, 1
      %s27 = ssub.s32 %s19, %s26
      %p28 = scmp.eq.s32.totalorder %s27, 0
      %s30 = sadd.s32 %s29, 1
      %s31 = scalar_select %p28, %s29, %s30
      %p34 = pneg %p28
      %p35 = scmp.eq.s32.totalorder %s19, 1
      %p36 = por %p34, %p35
      %p37 = scmp.ne.s32.totalorder %s29, %s32
      %p38 = scmp.eq.s32.totalorder %s19, 0
      %p39 = por %p37, %p38
      %p40 = scmp.ne.s32.totalorder %s29, %s32
      %p41 = scmp.eq.s32.totalorder %s24, 1
      %p42 = por %p40, %p41
      %p43 = scmp.ne.s32.totalorder %s32, %s33
      %p44 = scmp.eq.s32.totalorder %s24, 0
      %p45 = por %p43, %p44
      %p46 = scmp.ne.s32.totalorder %s32, %s33
      %p47 = scmp.eq.s32.totalorder %s25, 1
      %p48 = por %p46, %p47
      %p50 = scmp.ne.s32.totalorder %s33, %s49
      %p51 = scmp.eq.s32.totalorder %s25, 0
      %p52 = por %p50, %p51
      %s53 = ssub.s32 %s19, %s26
      %p54 = scmp.eq.s32.totalorder %s53, 0
      %s56 = sadd.s32 %s55, 1
      %s57 = scalar_select %p54, %s55, %s56
      %p60 = pneg %p54
      %p61 = scmp.eq.s32.totalorder %s19, 1
      %p62 = por %p60, %p61
      %p63 = scmp.ne.s32.totalorder %s55, %s58
      %p64 = scmp.eq.s32.totalorder %s19, 0
      %p65 = por %p63, %p64
      %p66 = scmp.ne.s32.totalorder %s55, %s58
      %p67 = scmp.eq.s32.totalorder %s24, 1
      %p68 = por %p66, %p67
      %p69 = scmp.ne.s32.totalorder %s58, %s59
      %p70 = scmp.eq.s32.totalorder %s24, 0
      %p71 = por %p69, %p70
      %p72 = scmp.ne.s32.totalorder %s58, %s59
      %p73 = scmp.eq.s32.totalorder %s25, 1
      %p74 = por %p72, %p73
      %p76 = scmp.ne.s32.totalorder %s59, %s75
      %p77 = scmp.eq.s32.totalorder %s25, 0
      %p78 = por %p76, %p77
      %s79 = ssub.s32 %s19, %s26
      %p80 = scmp.eq.s32.totalorder %s79, 0
      %s82 = sadd.s32 %s81, 1
      %s83 = scalar_select %p80, %s81, %s82
      %p86 = pneg %p80
      %p87 = scmp.eq.s32.totalorder %s19, 1
      %p88 = por %p86, %p87
      %p89 = scmp.ne.s32.totalorder %s81, %s84
      %p90 = scmp.eq.s32.totalorder %s19, 0
      %p91 = por %p89, %p90
      %p92 = scmp.ne.s32.totalorder %s81, %s84
      %p93 = scmp.eq.s32.totalorder %s24, 1
      %p94 = por %p92, %p93
      %p95 = scmp.ne.s32.totalorder %s84, %s85
      %p96 = scmp.eq.s32.totalorder %s24, 0
      %p97 = por %p95, %p96
      %p98 = scmp.ne.s32.totalorder %s84, %s85
      %p99 = scmp.eq.s32.totalorder %s25, 1
      %p100 = por %p98, %p99
      %p102 = scmp.ne.s32.totalorder %s85, %s101
      %p103 = scmp.eq.s32.totalorder %s25, 0
      %p104 = por %p102, %p103
      %s105 = ssub.s32 %s19, %s26
      %p106 = scmp.eq.s32.totalorder %s105, 0
      %s108 = sadd.s32 %s107, 1
      %s109 = scalar_select %p106, %s107, %s108
      %p112 = pneg %p106
      %p113 = scmp.eq.s32.totalorder %s19, 1
      %p114 = por %p112, %p113
      %p115 = scmp.ne.s32.totalorder %s107, %s110
      %p116 = scmp.eq.s32.totalorder %s19, 0
      %p117 = por %p115, %p116
      %p118 = scmp.ne.s32.totalorder %s107, %s110
      %p119 = scmp.eq.s32.totalorder %s24, 1
      %p120 = por %p118, %p119
      %p121 = scmp.ne.s32.totalorder %s110, %s111
      %p122 = scmp.eq.s32.totalorder %s24, 0
      %p123 = por %p121, %p122
      %p124 = scmp.ne.s32.totalorder %s110, %s111
      %p125 = scmp.eq.s32.totalorder %s25, 1
      %p126 = por %p124, %p125
      %p128 = scmp.ne.s32.totalorder %s111, %s127
      %p129 = scmp.eq.s32.totalorder %s25, 0
      %p130 = por %p128, %p129
      %s131 = ssub.s32 %s19, %s26
      %p132 = scmp.eq.s32.totalorder %s131, 0
      %s134 = sadd.s32 %s133, 1
      %s135 = scalar_select %p132, %s133, %s134
      %p138 = pneg %p132
      %p139 = scmp.eq.s32.totalorder %s19, 1
      %p140 = por %p138, %p139
      %p141 = scmp.ne.s32.totalorder %s133, %s136
      %p142 = scmp.eq.s32.totalorder %s19, 0
      %p143 = por %p141, %p142
      %p144 = scmp.ne.s32.totalorder %s133, %s136
      %p145 = scmp.eq.s32.totalorder %s24, 1
      %p146 = por %p144, %p145
      %p147 = scmp.ne.s32.totalorder %s136, %s137
      %p148 = scmp.eq.s32.totalorder %s24, 0
      %p149 = por %p147, %p148
      %p150 = scmp.ne.s32.totalorder %s136, %s137
      %p151 = scmp.eq.s32.totalorder %s25, 1
      %p152 = por %p150, %p151
      %p154 = scmp.ne.s32.totalorder %s137, %s153
      %p155 = scmp.eq.s32.totalorder %s25, 0
      %p156 = por %p154, %p155
      %p157 = scmp.le.s32.totalorder 1, %s19
      %p158 = scmp.lt.s32.totalorder %s19, 3
      %p159 = pnand %p157, %p158
      %p160 = pneg %p159
      // Predicated region
      $region9: #{tpu_custom_call.1} parent=5 // pred_check
        _
      $region10: #{tpu_custom_call.1} parent=5 // pred_check_branch
        %162 = sbr.rel (%p159) target = $region12
      $region11: #{tpu_custom_call.1} parent=5 // pred_region
        %s163 = ssub.s32 %s19, 1
      $region12: #{tpu_custom_call.1} parent=5 // pred_fallthru
        _
      %p164 = scmp.lt.s32.totalorder %s19, 2
      // Predicated region
      $region13: #{tpu_custom_call.1} parent=5 // pred_check
        %p165 = pneg %p164
      $region14: #{tpu_custom_call.1} parent=5 // pred_check_branch
        %167 = sbr.rel (%p165) target = $region16
      $region15: #{tpu_custom_call.1} parent=5 // pred_region
        // Predicated region
        $region17: #{tpu_custom_call.1} parent=15 // pred_check
          %p168 = pneg %p39
        $region18: #{tpu_custom_call.1} parent=15 // pred_check_branch
          %170 = sbr.rel (%p168) target = $region20
        $region19: #{tpu_custom_call.1} parent=15 // pred_region
          %s171 = sand.u32 %s29, 1
          %s172 = scalar_lea.sflag [#allocation3], %s171
          %s173 = sand.u32 %s29, 1
          %s174 = smul.addr %s173, 8
          %s175 = scalar_lea.vmem [#allocation2], %s174
          %s177 = ssub.s32 128, 128
          %178 = vsyncadd %s172, %s177
          %s179 = smul.addr %s19, 128
          %s180 = scalar_lea.hbm %s0, %s179
          %s182 = sshll.u32 %s175, 4
          %s183 = int_to_ptr.vmem [resolvable:$true] %s182
          %185 = dma.hbm_to_vmem [thread:$0]  %s180, 128, %s183, %s172
        $region20: #{tpu_custom_call.1} parent=15 // pred_fallthru
          _
        // Predicated region
        $region21: #{tpu_custom_call.1} parent=15 // pred_check
          %p186 = pneg %p65
        $region22: #{tpu_custom_call.1} parent=15 // pred_check_branch
          %188 = sbr.rel (%p186) target = $region24
        $region23: #{tpu_custom_call.1} parent=15 // pred_region
          %s189 = sand.u32 %s19, 1
          %s190 = scalar_lea.sflag [#allocation6], %s189
          %s191 = sand.u32 %s55, 1
          %s192 = smul.addr %s191, 4
          %s193 = scalar_lea.vmem [#allocation5], %s192
          %s195 = ssub.s32 64, 64
          %196 = vsyncadd %s190, %s195
          %s197 = smul.addr %s19, 64
          %s198 = scalar_lea.hbm %s1, %s197
          %s200 = sshll.u32 %s193, 4
          %s201 = int_to_ptr.vmem [resolvable:$true] %s200
          %203 = dma.hbm_to_vmem [thread:$0]  %s198, 64, %s201, %s190
        $region24: #{tpu_custom_call.1} parent=15 // pred_fallthru
          _
        // Predicated region
        $region25: #{tpu_custom_call.1} parent=15 // pred_check
          %p204 = pneg %p91
        $region26: #{tpu_custom_call.1} parent=15 // pred_check_branch
          %206 = sbr.rel (%p204) target = $region28
        $region27: #{tpu_custom_call.1} parent=15 // pred_region
          %s207 = sand.u32 %s19, 1
          %s208 = scalar_lea.sflag [#allocation6], %s207
          %s209 = sand.u32 %s81, 1
          %s210 = smul.addr %s209, 4
          %s211 = scalar_lea.vmem [#allocation7], %s210
          %s213 = ssub.s32 64, 64
          %214 = vsyncadd %s208, %s213
          %s215 = smul.addr %s19, 64
          %s216 = scalar_lea.hbm %s2, %s215
          %s218 = sshll.u32 %s211, 4
          %s219 = int_to_ptr.vmem [resolvable:$true] %s218
          %221 = dma.hbm_to_vmem [thread:$0]  %s216, 64, %s219, %s208
        $region28: #{tpu_custom_call.1} parent=15 // pred_fallthru
          _
        // Predicated region
        $region29: #{tpu_custom_call.1} parent=15 // pred_check
          %p222 = pneg %p117
        $region30: #{tpu_custom_call.1} parent=15 // pred_check_branch
          %224 = sbr.rel (%p222) target = $region32
        $region31: #{tpu_custom_call.1} parent=15 // pred_region
          %p225 = scmp.lt.s32.totalorder %s19, 1
          %s226 = scalar_select %p225, %s19, 1
          %s227 = scalar_lea.vmem %s3, %s226
        $region32: #{tpu_custom_call.1} parent=15 // pred_fallthru
          _
      $region16: #{tpu_custom_call.1} parent=5 // pred_fallthru
        _
      %p228 = scmp.le.s32.totalorder 1, %s19
      %p229 = scmp.lt.s32.totalorder %s19, 3
      %p230 = pnand %p228, %p229
      %p231 = pneg %p230
      // Predicated region
      $region33: #{tpu_custom_call.1} parent=5 // pred_check
        _
      $region34: #{tpu_custom_call.1} parent=5 // pred_check_branch
        %233 = sbr.rel (%p230) target = $region36
      $region35: #{tpu_custom_call.1} parent=5 // pred_region
        %s234 = ssub.s32 %s19, 1
        %s235 = sand.u32 %s32, 1
        %s236 = scalar_lea.sflag [#allocation3], %s235
        %s237 = sand.u32 %s32, 1
        %s238 = smul.addr %s237, 8
        %s239 = scalar_lea.vmem [#allocation2], %s238
        // Predicated region
        $region37: #{tpu_custom_call.1} parent=35 // pred_check
          %p240 = pneg %p45
        $region38: #{tpu_custom_call.1} parent=35 // pred_check_branch
          %242 = sbr.rel (%p240) target = $region40
        $region39: #{tpu_custom_call.1} parent=35 // pred_region
          %243 = dma.done %s236, 128
        $region40: #{tpu_custom_call.1} parent=35 // pred_fallthru
          _
        %s244 = sand.u32 %s24, 1
        %s245 = scalar_lea.sflag [#allocation6], %s244
        %s246 = sand.u32 %s58, 1
        %s247 = smul.addr %s246, 4
        %s248 = scalar_lea.vmem [#allocation5], %s247
        // Predicated region
        $region41: #{tpu_custom_call.1} parent=35 // pred_check
          %p249 = pneg %p71
        $region42: #{tpu_custom_call.1} parent=35 // pred_check_branch
          %251 = sbr.rel (%p249) target = $region44
        $region43: #{tpu_custom_call.1} parent=35 // pred_region
          %252 = dma.done %s245, 64
        $region44: #{tpu_custom_call.1} parent=35 // pred_fallthru
          _
        %s253 = sand.u32 %s24, 1
        %s254 = scalar_lea.sflag [#allocation6], %s253
        %s255 = sand.u32 %s84, 1
        %s256 = smul.addr %s255, 4
        %s257 = scalar_lea.vmem [#allocation7], %s256
        // Predicated region
        $region45: #{tpu_custom_call.1} parent=35 // pred_check
          %p258 = pneg %p97
        $region46: #{tpu_custom_call.1} parent=35 // pred_check_branch
          %260 = sbr.rel (%p258) target = $region48
        $region47: #{tpu_custom_call.1} parent=35 // pred_region
          %261 = dma.done %s254, 64
        $region48: #{tpu_custom_call.1} parent=35 // pred_fallthru
          _
        %s262 = sand.u32 %s32, 1
        %s263 = scalar_lea.sflag [#allocation3], %s262
        %s264 = sand.u32 %s32, 1
        %s265 = smul.addr %s264, 8
        %s266 = scalar_lea.vmem [#allocation2], %s265
        %p267 = pneg %p45
        %p268 = pneg %p42
        %s269 = sand.u32 %s24, 1
        %s270 = scalar_lea.sflag [#allocation6], %s269
        %s271 = sand.u32 %s58, 1
        %s272 = smul.addr %s271, 4
        %s273 = scalar_lea.vmem [#allocation5], %s272
        %p274 = pneg %p71
        %p275 = pneg %p68
        %s276 = sand.u32 %s24, 1
        %s277 = scalar_lea.sflag [#allocation6], %s276
        %s278 = sand.u32 %s84, 1
        %s279 = smul.addr %s278, 4
        %s280 = scalar_lea.vmem [#allocation7], %s279
        %p281 = pneg %p97
        %p282 = pneg %p94
        %p283 = scmp.lt.s32.totalorder %s24, 1
        %s284 = scalar_select %p283, %s24, 1
        %s285 = scalar_lea.vmem %s3, %s284
        %p286 = pneg %p123
        %p287 = pneg %p120
        %p288 = pneg %p149
        %p289 = pneg %p146
        %s290 = sand.u32 %s136, 1
        %s291 = scalar_lea.sflag [#allocation4], %s290
        %s292 = sand.u32 %s136, 1
        %s293 = smul.addr %s292, 2
        %s294 = scalar_lea.vmem [#allocation8], %s293
        %p295 = scmp.lt.s32.totalorder %s24, 1
        %s296 = scalar_select %p295, %s24, 1
        %s297 = scalar_lea.vmem %s3, %s296
        %v298 = vld [vmem:[%s297] sm:$0x1]
        %vm299 = vcmp.gt.s32.totalorder %v298, 0
        %v300 = vld [vmem:[%s239] sm:$0x1]
        %v301 = vld [vmem:[%s239 + $0x1] sm:$0x1]
        %v302 = vmax.f32 %v300, %v301
        %v303 = vld [vmem:[%s239 + $0x2] sm:$0x1]
        %v304 = vmax.f32 %v302, %v303
        %v305 = vld [vmem:[%s239 + $0x3] sm:$0x1]
        %v306 = vmax.f32 %v304, %v305
        %v307 = vld [vmem:[%s239 + $0x4] sm:$0x1]
        %v308 = vmax.f32 %v306, %v307
        %v309 = vld [vmem:[%s239 + $0x5] sm:$0x1]
        %v310 = vmax.f32 %v308, %v309
        %v311 = vld [vmem:[%s239 + $0x6] sm:$0x1]
        %v312 = vmax.f32 %v310, %v311
        %v313 = vld [vmem:[%s239 + $0x7] sm:$0x1]
        %v314 = vmax.f32 %v312, %v313
        %v315 = vsub.f32 %v300, %v314
        %v316 = vmul.f32 %v315, 1.442695
        %v317 = vpow.pop %v316
        %v318 = vadd.f32 %v317, 0.0
        %vm319 = vcmp.eq.s32.totalorder %v298, 0
        %v320 = vsel %vm319, %v300, 0.0
        %v321 = vadd.f32 %v320, 0.0
        %v322 = vsub.f32 %v301, %v314
        %v323 = vmul.f32 %v322, 1.442695
        %v324 = vpow.pop %v323
        %v325 = vadd.f32 %v318, %v324
        %vm326 = vcmp.eq.s32.totalorder %v298, 1
        %v327 = vsel %vm326, %v301, 0.0
        %v328 = vadd.f32 %v321, %v327
        %v329 = vsub.f32 %v303, %v314
        %v330 = vmul.f32 %v329, 1.442695
        %v331 = vpow.pop %v330
        %v332 = vadd.f32 %v325, %v331
        %vm333 = vcmp.eq.s32.totalorder %v298, 2
        %v334 = vsel %vm333, %v303, 0.0
        %v335 = vadd.f32 %v328, %v334
        %v336 = vsub.f32 %v305, %v314
        %v337 = vmul.f32 %v336, 1.442695
        %v338 = vpow.pop %v337
        %v339 = vadd.f32 %v332, %v338
        %vm340 = vcmp.eq.s32.totalorder %v298, 3
        %v341 = vsel %vm340, %v305, 0.0
        %v342 = vadd.f32 %v335, %v341
        %v343 = vsub.f32 %v307, %v314
        %v344 = vmul.f32 %v343, 1.442695
        %v345 = vpow.pop %v344
        %v346 = vadd.f32 %v339, %v345
        %vm347 = vcmp.eq.s32.totalorder %v298, 4
        %v348 = vsel %vm347, %v307, 0.0
        %v349 = vadd.f32 %v342, %v348
        %v350 = vsub.f32 %v309, %v314
        %v351 = vmul.f32 %v350, 1.442695
        %v352 = vpow.pop %v351
        %v353 = vadd.f32 %v346, %v352
        %vm354 = vcmp.eq.s32.totalorder %v298, 5
        %v355 = vsel %vm354, %v309, 0.0
        %v356 = vadd.f32 %v349, %v355
        %v357 = vsub.f32 %v311, %v314
        %v358 = vmul.f32 %v357, 1.442695
        %v359 = vpow.pop %v358
        %v360 = vadd.f32 %v353, %v359
        %vm361 = vcmp.eq.s32.totalorder %v298, 6
        %v362 = vsel %vm361, %v311, 0.0
        %v363 = vadd.f32 %v356, %v362
        %v364 = vsub.f32 %v313, %v314
        %v365 = vmul.f32 %v364, 1.442695
        %v366 = vpow.pop %v365
        %v367 = vadd.f32 %v360, %v366
        %vm368 = vcmp.eq.s32.totalorder %v298, 7
        %v369 = vsel %vm368, %v313, 0.0
        %v370 = vadd.f32 %v363, %v369
        %v371 = vlog2.pop %v367
        %v372 = vmul.f32 %v371, 0.6931472
        %v373 = vadd.f32 %v314, %v372
        %v374 = vsub.f32 %v373, %v300
        %v375 = vsub.f32 %v373, %v370
        %v376 = vsel %vm299, 1, 0
        %vm377 = vcmask 516096
        %v378 = vsel %vm377, %v376, 0
        %v379 = vand.u32 %v378, 65535
        %v380 = vshrl.u32 %v378, 16
        %v381 = vcvt.s32.f32 %v379
        %v382 = vcvt.s32.f32 %v380
        %383 = vadd.xlane.f32.xlu0 %v381
        %v384 = vpop.xlane.xlu0 %383
        %385 = vadd.xlane.f32.xlu0 %v382
        %v386 = vpop.xlane.xlu0 %385
        %v387 = vcvt.f32.s32 %v384
        %v388 = vcvt.f32.s32 %v386
        %v389 = vshll.u32 %v388, 16
        %v390 = vadd.s32 %v389, %v387
        %v391 = vrot.slane %v390, 4
        %v392 = vadd.s32 %v390, %v391
        %v393 = vrot.slane %v392, 2
        %v394 = vadd.s32 %v392, %v393
        %v395 = vrot.slane %v394, 1
        %v396 = vadd.s32 %v394, %v395
        %s397 = vtos %v396
        %s398 = smul.u32 %s397, 3
        %v400 = vadd.s32 %v374, 1
        %v401 = vsel %vm299, 0, %v400
        %vm402 = vcmp.ge.s32.totalorder %v401, 1073741824
        %v403 = vsel %vm402, 1, 0
        %v404 = vsel %vm377, %v403, 0
        %v405 = vand.u32 %v404, 65535
        %v406 = vshrl.u32 %v404, 16
        %v407 = vcvt.s32.f32 %v405
        %v408 = vcvt.s32.f32 %v406
        %409 = vadd.xlane.f32.xlu0 %v407
        %v410 = vpop.xlane.xlu0 %409
        %411 = vadd.xlane.f32.xlu0 %v408
        %v412 = vpop.xlane.xlu0 %411
        %v413 = vcvt.f32.s32 %v410
        %v414 = vcvt.f32.s32 %v412
        %v415 = vshll.u32 %v414, 16
        %v416 = vadd.s32 %v415, %v413
        %v417 = vrot.slane %v416, 4
        %v418 = vadd.s32 %v416, %v417
        %v419 = vrot.slane %v418, 2
        %v420 = vadd.s32 %v418, %v419
        %v421 = vrot.slane %v420, 1
        %v422 = vadd.s32 %v420, %v421
        %s423 = vtos %v422
        %p424 = scmp.ge.s32.totalorder %s423, %s398
        %s425 = scalar_select %p424, 1073741824, 0
        %s426 = sadd.s32 %s425, 536870912
        %v427 = vstv %s426
        %vm428 = vcmp.ge.s32.totalorder %v401, %v427
        %v429 = vsel %vm428, 1, 0
        %v430 = vsel %vm377, %v429, 0
        %v431 = vand.u32 %v430, 65535
        %v432 = vshrl.u32 %v430, 16
        %v433 = vcvt.s32.f32 %v431
        %v434 = vcvt.s32.f32 %v432
        %435 = vadd.xlane.f32.xlu0 %v433
        %v436 = vpop.xlane.xlu0 %435
        %437 = vadd.xlane.f32.xlu0 %v434
        %v438 = vpop.xlane.xlu0 %437
        %v439 = vcvt.f32.s32 %v436
        %v440 = vcvt.f32.s32 %v438
        %v441 = vshll.u32 %v440, 16
        %v442 = vadd.s32 %v441, %v439
        %v443 = vrot.slane %v442, 4
        %v444 = vadd.s32 %v442, %v443
        %v445 = vrot.slane %v444, 2
        %v446 = vadd.s32 %v444, %v445
        %v447 = vrot.slane %v446, 1
        %v448 = vadd.s32 %v446, %v447
        %s449 = vtos %v448
        %p450 = scmp.ge.s32.totalorder %s449, %s398
        %s451 = scalar_select %p450, %s426, %s425
        %s452 = sadd.s32 %s451, 268435456
        %v453 = vstv %s452
        %vm454 = vcmp.ge.s32.totalorder %v401, %v453
        %v455 = vsel %vm454, 1, 0
        %v456 = vsel %vm377, %v455, 0
        %v457 = vand.u32 %v456, 65535
        %v458 = vshrl.u32 %v456, 16
        %v459 = vcvt.s32.f32 %v457
        %v460 = vcvt.s32.f32 %v458
        %461 = vadd.xlane.f32.xlu0 %v459
        %v462 = vpop.xlane.xlu0 %461
        %463 = vadd.xlane.f32.xlu0 %v460
        %v464 = vpop.xlane.xlu0 %463
        %v465 = vcvt.f32.s32 %v462
        %v466 = vcvt.f32.s32 %v464
        %v467 = vshll.u32 %v466, 16
        %v468 = vadd.s32 %v467, %v465
        %v469 = vrot.slane %v468, 4
        %v470 = vadd.s32 %v468, %v469
        %v471 = vrot.slane %v470, 2
        %v472 = vadd.s32 %v470, %v471
        %v473 = vrot.slane %v472, 1
        %v474 = vadd.s32 %v472, %v473
        %s475 = vtos %v474
        %p476 = scmp.ge.s32.totalorder %s475, %s398
        %s477 = scalar_select %p476, %s452, %s451
        %s478 = sadd.s32 %s477, 134217728
        %v479 = vstv %s478
        %vm480 = vcmp.ge.s32.totalorder %v401, %v479
        %v481 = vsel %vm480, 1, 0
        %v482 = vsel %vm377, %v481, 0
        %v483 = vand.u32 %v482, 65535
        %v484 = vshrl.u32 %v482, 16
        %v485 = vcvt.s32.f32 %v483
        %v486 = vcvt.s32.f32 %v484
        %487 = vadd.xlane.f32.xlu0 %v485
        %v488 = vpop.xlane.xlu0 %487
        %489 = vadd.xlane.f32.xlu0 %v486
        %v490 = vpop.xlane.xlu0 %489
        %v491 = vcvt.f32.s32 %v488
        %v492 = vcvt.f32.s32 %v490
        %v493 = vshll.u32 %v492, 16
        %v494 = vadd.s32 %v493, %v491
        %v495 = vrot.slane %v494, 4
        %v496 = vadd.s32 %v494, %v495
        %v497 = vrot.slane %v496, 2
        %v498 = vadd.s32 %v496, %v497
        %v499 = vrot.slane %v498, 1
        %v500 = vadd.s32 %v498, %v499
        %s501 = vtos %v500
        %p502 = scmp.ge.s32.totalorder %s501, %s398
        %s503 = scalar_select %p502, %s478, %s477
        %s504 = sadd.s32 %s503, 67108864
        %v505 = vstv %s504
        %vm506 = vcmp.ge.s32.totalorder %v401, %v505
        %v507 = vsel %vm506, 1, 0
        %v508 = vsel %vm377, %v507, 0
        %v509 = vand.u32 %v508, 65535
        %v510 = vshrl.u32 %v508, 16
        %v511 = vcvt.s32.f32 %v509
        %v512 = vcvt.s32.f32 %v510
        %513 = vadd.xlane.f32.xlu0 %v511
        %v514 = vpop.xlane.xlu0 %513
        %515 = vadd.xlane.f32.xlu0 %v512
        %v516 = vpop.xlane.xlu0 %515
        %v517 = vcvt.f32.s32 %v514
        %v518 = vcvt.f32.s32 %v516
        %v519 = vshll.u32 %v518, 16
        %v520 = vadd.s32 %v519, %v517
        %v521 = vrot.slane %v520, 4
        %v522 = vadd.s32 %v520, %v521
        %v523 = vrot.slane %v522, 2
        %v524 = vadd.s32 %v522, %v523
        %v525 = vrot.slane %v524, 1
        %v526 = vadd.s32 %v524, %v525
        %s527 = vtos %v526
        %p528 = scmp.ge.s32.totalorder %s527, %s398
        %s529 = scalar_select %p528, %s504, %s503
        %s530 = sadd.s32 %s529, 33554432
        %v531 = vstv %s530
        %vm532 = vcmp.ge.s32.totalorder %v401, %v531
        %v533 = vsel %vm532, 1, 0
        %v534 = vsel %vm377, %v533, 0
        %v535 = vand.u32 %v534, 65535
        %v536 = vshrl.u32 %v534, 16
        %v537 = vcvt.s32.f32 %v535
        %v538 = vcvt.s32.f32 %v536
        %539 = vadd.xlane.f32.xlu0 %v537
        %v540 = vpop.xlane.xlu0 %539
        %541 = vadd.xlane.f32.xlu0 %v538
        %v542 = vpop.xlane.xlu0 %541
        %v543 = vcvt.f32.s32 %v540
        %v544 = vcvt.f32.s32 %v542
        %v545 = vshll.u32 %v544, 16
        %v546 = vadd.s32 %v545, %v543
        %v547 = vrot.slane %v546, 4
        %v548 = vadd.s32 %v546, %v547
        %v549 = vrot.slane %v548, 2
        %v550 = vadd.s32 %v548, %v549
        %v551 = vrot.slane %v550, 1
        %v552 = vadd.s32 %v550, %v551
        %s553 = vtos %v552
        %p554 = scmp.ge.s32.totalorder %s553, %s398
        %s555 = scalar_select %p554, %s530, %s529
        %s556 = sadd.s32 %s555, 16777216
        %v557 = vstv %s556
        %vm558 = vcmp.ge.s32.totalorder %v401, %v557
        %v559 = vsel %vm558, 1, 0
        %v560 = vsel %vm377, %v559, 0
        %v561 = vand.u32 %v560, 65535
        %v562 = vshrl.u32 %v560, 16
        %v563 = vcvt.s32.f32 %v561
        %v564 = vcvt.s32.f32 %v562
        %565 = vadd.xlane.f32.xlu0 %v563
        %v566 = vpop.xlane.xlu0 %565
        %567 = vadd.xlane.f32.xlu0 %v564
        %v568 = vpop.xlane.xlu0 %567
        %v569 = vcvt.f32.s32 %v566
        %v570 = vcvt.f32.s32 %v568
        %v571 = vshll.u32 %v570, 16
        %v572 = vadd.s32 %v571, %v569
        %v573 = vrot.slane %v572, 4
        %v574 = vadd.s32 %v572, %v573
        %v575 = vrot.slane %v574, 2
        %v576 = vadd.s32 %v574, %v575
        %v577 = vrot.slane %v576, 1
        %v578 = vadd.s32 %v576, %v577
        %s579 = vtos %v578
        %p580 = scmp.ge.s32.totalorder %s579, %s398
        %s581 = scalar_select %p580, %s556, %s555
        %s582 = sadd.s32 %s581, 8388608
        %v583 = vstv %s582
        %vm584 = vcmp.ge.s32.totalorder %v401, %v583
        %v585 = vsel %vm584, 1, 0
        %v586 = vsel %vm377, %v585, 0
        %v587 = vand.u32 %v586, 65535
        %v588 = vshrl.u32 %v586, 16
        %v589 = vcvt.s32.f32 %v587
        %v590 = vcvt.s32.f32 %v588
        %591 = vadd.xlane.f32.xlu0 %v589
        %v592 = vpop.xlane.xlu0 %591
        %593 = vadd.xlane.f32.xlu0 %v590
        %v594 = vpop.xlane.xlu0 %593
        %v595 = vcvt.f32.s32 %v592
        %v596 = vcvt.f32.s32 %v594
        %v597 = vshll.u32 %v596, 16
        %v598 = vadd.s32 %v597, %v595
        %v599 = vrot.slane %v598, 4
        %v600 = vadd.s32 %v598, %v599
        %v601 = vrot.slane %v600, 2
        %v602 = vadd.s32 %v600, %v601
        %v603 = vrot.slane %v602, 1
        %v604 = vadd.s32 %v602, %v603
        %s605 = vtos %v604
        %p606 = scmp.ge.s32.totalorder %s605, %s398
        %s607 = scalar_select %p606, %s582, %s581
        %s608 = sadd.s32 %s607, 4194304
        %v609 = vstv %s608
        %vm610 = vcmp.ge.s32.totalorder %v401, %v609
        %v611 = vsel %vm610, 1, 0
        %v612 = vsel %vm377, %v611, 0
        %v613 = vand.u32 %v612, 65535
        %v614 = vshrl.u32 %v612, 16
        %v615 = vcvt.s32.f32 %v613
        %v616 = vcvt.s32.f32 %v614
        %617 = vadd.xlane.f32.xlu0 %v615
        %v618 = vpop.xlane.xlu0 %617
        %619 = vadd.xlane.f32.xlu0 %v616
        %v620 = vpop.xlane.xlu0 %619
        %v621 = vcvt.f32.s32 %v618
        %v622 = vcvt.f32.s32 %v620
        %v623 = vshll.u32 %v622, 16
        %v624 = vadd.s32 %v623, %v621
        %v625 = vrot.slane %v624, 4
        %v626 = vadd.s32 %v624, %v625
        %v627 = vrot.slane %v626, 2
        %v628 = vadd.s32 %v626, %v627
        %v629 = vrot.slane %v628, 1
        %v630 = vadd.s32 %v628, %v629
        %s631 = vtos %v630
        %p632 = scmp.ge.s32.totalorder %s631, %s398
        %s633 = scalar_select %p632, %s608, %s607
        %s634 = sadd.s32 %s633, 2097152
        %v635 = vstv %s634
        %vm636 = vcmp.ge.s32.totalorder %v401, %v635
        %v637 = vsel %vm636, 1, 0
        %v638 = vsel %vm377, %v637, 0
        %v639 = vand.u32 %v638, 65535
        %v640 = vshrl.u32 %v638, 16
        %v641 = vcvt.s32.f32 %v639
        %v642 = vcvt.s32.f32 %v640
        %643 = vadd.xlane.f32.xlu0 %v641
        %v644 = vpop.xlane.xlu0 %643
        %645 = vadd.xlane.f32.xlu0 %v642
        %v646 = vpop.xlane.xlu0 %645
        %v647 = vcvt.f32.s32 %v644
        %v648 = vcvt.f32.s32 %v646
        %v649 = vshll.u32 %v648, 16
        %v650 = vadd.s32 %v649, %v647
        %v651 = vrot.slane %v650, 4
        %v652 = vadd.s32 %v650, %v651
        %v653 = vrot.slane %v652, 2
        %v654 = vadd.s32 %v652, %v653
        %v655 = vrot.slane %v654, 1
        %v656 = vadd.s32 %v654, %v655
        %s657 = vtos %v656
        %p658 = scmp.ge.s32.totalorder %s657, %s398
        %s659 = scalar_select %p658, %s634, %s633
        %s660 = sadd.s32 %s659, 1048576
        %v661 = vstv %s660
        %vm662 = vcmp.ge.s32.totalorder %v401, %v661
        %v663 = vsel %vm662, 1, 0
        %v664 = vsel %vm377, %v663, 0
        %v665 = vand.u32 %v664, 65535
        %v666 = vshrl.u32 %v664, 16
        %v667 = vcvt.s32.f32 %v665
        %v668 = vcvt.s32.f32 %v666
        %669 = vadd.xlane.f32.xlu0 %v667
        %v670 = vpop.xlane.xlu0 %669
        %671 = vadd.xlane.f32.xlu0 %v668
        %v672 = vpop.xlane.xlu0 %671
        %v673 = vcvt.f32.s32 %v670
        %v674 = vcvt.f32.s32 %v672
        %v675 = vshll.u32 %v674, 16
        %v676 = vadd.s32 %v675, %v673
        %v677 = vrot.slane %v676, 4
        %v678 = vadd.s32 %v676, %v677
        %v679 = vrot.slane %v678, 2
        %v680 = vadd.s32 %v678, %v679
        %v681 = vrot.slane %v680, 1
        %v682 = vadd.s32 %v680, %v681
        %s683 = vtos %v682
        %p684 = scmp.ge.s32.totalorder %s683, %s398
        %s685 = scalar_select %p684, %s660, %s659
        %s686 = sadd.s32 %s685, 524288
        %v687 = vstv %s686
        %vm688 = vcmp.ge.s32.totalorder %v401, %v687
        %v689 = vsel %vm688, 1, 0
        %v690 = vsel %vm377, %v689, 0
        %v691 = vand.u32 %v690, 65535
        %v692 = vshrl.u32 %v690, 16
        %v693 = vcvt.s32.f32 %v691
        %v694 = vcvt.s32.f32 %v692
        %695 = vadd.xlane.f32.xlu0 %v693
        %v696 = vpop.xlane.xlu0 %695
        %697 = vadd.xlane.f32.xlu0 %v694
        %v698 = vpop.xlane.xlu0 %697
        %v699 = vcvt.f32.s32 %v696
        %v700 = vcvt.f32.s32 %v698
        %v701 = vshll.u32 %v700, 16
        %v702 = vadd.s32 %v701, %v699
        %v703 = vrot.slane %v702, 4
        %v704 = vadd.s32 %v702, %v703
        %v705 = vrot.slane %v704, 2
        %v706 = vadd.s32 %v704, %v705
        %v707 = vrot.slane %v706, 1
        %v708 = vadd.s32 %v706, %v707
        %s709 = vtos %v708
        %p710 = scmp.ge.s32.totalorder %s709, %s398
        %s711 = scalar_select %p710, %s686, %s685
        %s712 = sadd.s32 %s711, 262144
        %v713 = vstv %s712
        %vm714 = vcmp.ge.s32.totalorder %v401, %v713
        %v715 = vsel %vm714, 1, 0
        %v716 = vsel %vm377, %v715, 0
        %v717 = vand.u32 %v716, 65535
        %v718 = vshrl.u32 %v716, 16
        %v719 = vcvt.s32.f32 %v717
        %v720 = vcvt.s32.f32 %v718
        %721 = vadd.xlane.f32.xlu0 %v719
        %v722 = vpop.xlane.xlu0 %721
        %723 = vadd.xlane.f32.xlu0 %v720
        %v724 = vpop.xlane.xlu0 %723
        %v725 = vcvt.f32.s32 %v722
        %v726 = vcvt.f32.s32 %v724
        %v727 = vshll.u32 %v726, 16
        %v728 = vadd.s32 %v727, %v725
        %v729 = vrot.slane %v728, 4
        %v730 = vadd.s32 %v728, %v729
        %v731 = vrot.slane %v730, 2
        %v732 = vadd.s32 %v730, %v731
        %v733 = vrot.slane %v732, 1
        %v734 = vadd.s32 %v732, %v733
        %s735 = vtos %v734
        %p736 = scmp.ge.s32.totalorder %s735, %s398
        %s737 = scalar_select %p736, %s712, %s711
        %s738 = sadd.s32 %s737, 131072
        %v739 = vstv %s738
        %vm740 = vcmp.ge.s32.totalorder %v401, %v739
        %v741 = vsel %vm740, 1, 0
        %v742 = vsel %vm377, %v741, 0
        %v743 = vand.u32 %v742, 65535
        %v744 = vshrl.u32 %v742, 16
        %v745 = vcvt.s32.f32 %v743
        %v746 = vcvt.s32.f32 %v744
        %747 = vadd.xlane.f32.xlu0 %v745
        %v748 = vpop.xlane.xlu0 %747
        %749 = vadd.xlane.f32.xlu0 %v746
        %v750 = vpop.xlane.xlu0 %749
        %v751 = vcvt.f32.s32 %v748
        %v752 = vcvt.f32.s32 %v750
        %v753 = vshll.u32 %v752, 16
        %v754 = vadd.s32 %v753, %v751
        %v755 = vrot.slane %v754, 4
        %v756 = vadd.s32 %v754, %v755
        %v757 = vrot.slane %v756, 2
        %v758 = vadd.s32 %v756, %v757
        %v759 = vrot.slane %v758, 1
        %v760 = vadd.s32 %v758, %v759
        %s761 = vtos %v760
        %p762 = scmp.ge.s32.totalorder %s761, %s398
        %s763 = scalar_select %p762, %s738, %s737
        %s764 = sadd.s32 %s763, 65536
        %v765 = vstv %s764
        %vm766 = vcmp.ge.s32.totalorder %v401, %v765
        %v767 = vsel %vm766, 1, 0
        %v768 = vsel %vm377, %v767, 0
        %v769 = vand.u32 %v768, 65535
        %v770 = vshrl.u32 %v768, 16
        %v771 = vcvt.s32.f32 %v769
        %v772 = vcvt.s32.f32 %v770
        %773 = vadd.xlane.f32.xlu0 %v771
        %v774 = vpop.xlane.xlu0 %773
        %775 = vadd.xlane.f32.xlu0 %v772
        %v776 = vpop.xlane.xlu0 %775
        %v777 = vcvt.f32.s32 %v774
        %v778 = vcvt.f32.s32 %v776
        %v779 = vshll.u32 %v778, 16
        %v780 = vadd.s32 %v779, %v777
        %v781 = vrot.slane %v780, 4
        %v782 = vadd.s32 %v780, %v781
        %v783 = vrot.slane %v782, 2
        %v784 = vadd.s32 %v782, %v783
        %v785 = vrot.slane %v784, 1
        %v786 = vadd.s32 %v784, %v785
        %s787 = vtos %v786
        %p788 = scmp.ge.s32.totalorder %s787, %s398
        %s789 = scalar_select %p788, %s764, %s763
        %s790 = sadd.s32 %s789, 32768
        %v791 = vstv %s790
        %vm792 = vcmp.ge.s32.totalorder %v401, %v791
        %v793 = vsel %vm792, 1, 0
        %v794 = vsel %vm377, %v793, 0
        %v795 = vand.u32 %v794, 65535
        %v796 = vshrl.u32 %v794, 16
        %v797 = vcvt.s32.f32 %v795
        %v798 = vcvt.s32.f32 %v796
        %799 = vadd.xlane.f32.xlu0 %v797
        %v800 = vpop.xlane.xlu0 %799
        %801 = vadd.xlane.f32.xlu0 %v798
        %v802 = vpop.xlane.xlu0 %801
        %v803 = vcvt.f32.s32 %v800
        %v804 = vcvt.f32.s32 %v802
        %v805 = vshll.u32 %v804, 16
        %v806 = vadd.s32 %v805, %v803
        %v807 = vrot.slane %v806, 4
        %v808 = vadd.s32 %v806, %v807
        %v809 = vrot.slane %v808, 2
        %v810 = vadd.s32 %v808, %v809
        %v811 = vrot.slane %v810, 1
        %v812 = vadd.s32 %v810, %v811
        %s813 = vtos %v812
        %p814 = scmp.ge.s32.totalorder %s813, %s398
        %s815 = scalar_select %p814, %s790, %s789
        %s816 = sadd.s32 %s815, 16384
        %v817 = vstv %s816
        %vm818 = vcmp.ge.s32.totalorder %v401, %v817
        %v819 = vsel %vm818, 1, 0
        %v820 = vsel %vm377, %v819, 0
        %v821 = vand.u32 %v820, 65535
        %v822 = vshrl.u32 %v820, 16
        %v823 = vcvt.s32.f32 %v821
        %v824 = vcvt.s32.f32 %v822
        %825 = vadd.xlane.f32.xlu0 %v823
        %v826 = vpop.xlane.xlu0 %825
        %827 = vadd.xlane.f32.xlu0 %v824
        %v828 = vpop.xlane.xlu0 %827
        %v829 = vcvt.f32.s32 %v826
        %v830 = vcvt.f32.s32 %v828
        %v831 = vshll.u32 %v830, 16
        %v832 = vadd.s32 %v831, %v829
        %v833 = vrot.slane %v832, 4
        %v834 = vadd.s32 %v832, %v833
        %v835 = vrot.slane %v834, 2
        %v836 = vadd.s32 %v834, %v835
        %v837 = vrot.slane %v836, 1
        %v838 = vadd.s32 %v836, %v837
        %s839 = vtos %v838
        %p840 = scmp.ge.s32.totalorder %s839, %s398
        %s841 = scalar_select %p840, %s816, %s815
        %s842 = sadd.s32 %s841, 8192
        %v843 = vstv %s842
        %vm844 = vcmp.ge.s32.totalorder %v401, %v843
        %v845 = vsel %vm844, 1, 0
        %v846 = vsel %vm377, %v845, 0
        %v847 = vand.u32 %v846, 65535
        %v848 = vshrl.u32 %v846, 16
        %v849 = vcvt.s32.f32 %v847
        %v850 = vcvt.s32.f32 %v848
        %851 = vadd.xlane.f32.xlu0 %v849
        %v852 = vpop.xlane.xlu0 %851
        %853 = vadd.xlane.f32.xlu0 %v850
        %v854 = vpop.xlane.xlu0 %853
        %v855 = vcvt.f32.s32 %v852
        %v856 = vcvt.f32.s32 %v854
        %v857 = vshll.u32 %v856, 16
        %v858 = vadd.s32 %v857, %v855
        %v859 = vrot.slane %v858, 4
        %v860 = vadd.s32 %v858, %v859
        %v861 = vrot.slane %v860, 2
        %v862 = vadd.s32 %v860, %v861
        %v863 = vrot.slane %v862, 1
        %v864 = vadd.s32 %v862, %v863
        %s865 = vtos %v864
        %p866 = scmp.ge.s32.totalorder %s865, %s398
        %s867 = scalar_select %p866, %s842, %s841
        %s868 = sadd.s32 %s867, 4096
        %v869 = vstv %s868
        %vm870 = vcmp.ge.s32.totalorder %v401, %v869
        %v871 = vsel %vm870, 1, 0
        %v872 = vsel %vm377, %v871, 0
        %v873 = vand.u32 %v872, 65535
        %v874 = vshrl.u32 %v872, 16
        %v875 = vcvt.s32.f32 %v873
        %v876 = vcvt.s32.f32 %v874
        %877 = vadd.xlane.f32.xlu0 %v875
        %v878 = vpop.xlane.xlu0 %877
        %879 = vadd.xlane.f32.xlu0 %v876
        %v880 = vpop.xlane.xlu0 %879
        %v881 = vcvt.f32.s32 %v878
        %v882 = vcvt.f32.s32 %v880
        %v883 = vshll.u32 %v882, 16
        %v884 = vadd.s32 %v883, %v881
        %v885 = vrot.slane %v884, 4
        %v886 = vadd.s32 %v884, %v885
        %v887 = vrot.slane %v886, 2
        %v888 = vadd.s32 %v886, %v887
        %v889 = vrot.slane %v888, 1
        %v890 = vadd.s32 %v888, %v889
        %s891 = vtos %v890
        %p892 = scmp.ge.s32.totalorder %s891, %s398
        %s893 = scalar_select %p892, %s868, %s867
        %s894 = sadd.s32 %s893, 2048
        %v895 = vstv %s894
        %vm896 = vcmp.ge.s32.totalorder %v401, %v895
        %v897 = vsel %vm896, 1, 0
        %v898 = vsel %vm377, %v897, 0
        %v899 = vand.u32 %v898, 65535
        %v900 = vshrl.u32 %v898, 16
        %v901 = vcvt.s32.f32 %v899
        %v902 = vcvt.s32.f32 %v900
        %903 = vadd.xlane.f32.xlu0 %v901
        %v904 = vpop.xlane.xlu0 %903
        %905 = vadd.xlane.f32.xlu0 %v902
        %v906 = vpop.xlane.xlu0 %905
        %v907 = vcvt.f32.s32 %v904
        %v908 = vcvt.f32.s32 %v906
        %v909 = vshll.u32 %v908, 16
        %v910 = vadd.s32 %v909, %v907
        %v911 = vrot.slane %v910, 4
        %v912 = vadd.s32 %v910, %v911
        %v913 = vrot.slane %v912, 2
        %v914 = vadd.s32 %v912, %v913
        %v915 = vrot.slane %v914, 1
        %v916 = vadd.s32 %v914, %v915
        %s917 = vtos %v916
        %p918 = scmp.ge.s32.totalorder %s917, %s398
        %s919 = scalar_select %p918, %s894, %s893
        %s920 = sadd.s32 %s919, 1024
        %v921 = vstv %s920
        %vm922 = vcmp.ge.s32.totalorder %v401, %v921
        %v923 = vsel %vm922, 1, 0
        %v924 = vsel %vm377, %v923, 0
        %v925 = vand.u32 %v924, 65535
        %v926 = vshrl.u32 %v924, 16
        %v927 = vcvt.s32.f32 %v925
        %v928 = vcvt.s32.f32 %v926
        %929 = vadd.xlane.f32.xlu0 %v927
        %v930 = vpop.xlane.xlu0 %929
        %931 = vadd.xlane.f32.xlu0 %v928
        %v932 = vpop.xlane.xlu0 %931
        %v933 = vcvt.f32.s32 %v930
        %v934 = vcvt.f32.s32 %v932
        %v935 = vshll.u32 %v934, 16
        %v936 = vadd.s32 %v935, %v933
        %v937 = vrot.slane %v936, 4
        %v938 = vadd.s32 %v936, %v937
        %v939 = vrot.slane %v938, 2
        %v940 = vadd.s32 %v938, %v939
        %v941 = vrot.slane %v940, 1
        %v942 = vadd.s32 %v940, %v941
        %s943 = vtos %v942
        %p944 = scmp.ge.s32.totalorder %s943, %s398
        %s945 = scalar_select %p944, %s920, %s919
        %s946 = sadd.s32 %s945, 512
        %v947 = vstv %s946
        %vm948 = vcmp.ge.s32.totalorder %v401, %v947
        %v949 = vsel %vm948, 1, 0
        %v950 = vsel %vm377, %v949, 0
        %v951 = vand.u32 %v950, 65535
        %v952 = vshrl.u32 %v950, 16
        %v953 = vcvt.s32.f32 %v951
        %v954 = vcvt.s32.f32 %v952
        %955 = vadd.xlane.f32.xlu0 %v953
        %v956 = vpop.xlane.xlu0 %955
        %957 = vadd.xlane.f32.xlu0 %v954
        %v958 = vpop.xlane.xlu0 %957
        %v959 = vcvt.f32.s32 %v956
        %v960 = vcvt.f32.s32 %v958
        %v961 = vshll.u32 %v960, 16
        %v962 = vadd.s32 %v961, %v959
        %v963 = vrot.slane %v962, 4
        %v964 = vadd.s32 %v962, %v963
        %v965 = vrot.slane %v964, 2
        %v966 = vadd.s32 %v964, %v965
        %v967 = vrot.slane %v966, 1
        %v968 = vadd.s32 %v966, %v967
        %s969 = vtos %v968
        %p970 = scmp.ge.s32.totalorder %s969, %s398
        %s971 = scalar_select %p970, %s946, %s945
        %s972 = sadd.s32 %s971, 256
        %v973 = vstv %s972
        %vm974 = vcmp.ge.s32.totalorder %v401, %v973
        %v975 = vsel %vm974, 1, 0
        %v976 = vsel %vm377, %v975, 0
        %v977 = vand.u32 %v976, 65535
        %v978 = vshrl.u32 %v976, 16
        %v979 = vcvt.s32.f32 %v977
        %v980 = vcvt.s32.f32 %v978
        %981 = vadd.xlane.f32.xlu0 %v979
        %v982 = vpop.xlane.xlu0 %981
        %983 = vadd.xlane.f32.xlu0 %v980
        %v984 = vpop.xlane.xlu0 %983
        %v985 = vcvt.f32.s32 %v982
        %v986 = vcvt.f32.s32 %v984
        %v987 = vshll.u32 %v986, 16
        %v988 = vadd.s32 %v987, %v985
        %v989 = vrot.slane %v988, 4
        %v990 = vadd.s32 %v988, %v989
        %v991 = vrot.slane %v990, 2
        %v992 = vadd.s32 %v990, %v991
        %v993 = vrot.slane %v992, 1
        %v994 = vadd.s32 %v992, %v993
        %s995 = vtos %v994
        %p996 = scmp.ge.s32.totalorder %s995, %s398
        %s997 = scalar_select %p996, %s972, %s971
        %s998 = sadd.s32 %s997, 128
        %v999 = vstv %s998
        %vm1000 = vcmp.ge.s32.totalorder %v401, %v999
        %v1001 = vsel %vm1000, 1, 0
        %v1002 = vsel %vm377, %v1001, 0
        %v1003 = vand.u32 %v1002, 65535
        %v1004 = vshrl.u32 %v1002, 16
        %v1005 = vcvt.s32.f32 %v1003
        %v1006 = vcvt.s32.f32 %v1004
        %1007 = vadd.xlane.f32.xlu0 %v1005
        %v1008 = vpop.xlane.xlu0 %1007
        %1009 = vadd.xlane.f32.xlu0 %v1006
        %v1010 = vpop.xlane.xlu0 %1009
        %v1011 = vcvt.f32.s32 %v1008
        %v1012 = vcvt.f32.s32 %v1010
        %v1013 = vshll.u32 %v1012, 16
        %v1014 = vadd.s32 %v1013, %v1011
        %v1015 = vrot.slane %v1014, 4
        %v1016 = vadd.s32 %v1014, %v1015
        %v1017 = vrot.slane %v1016, 2
        %v1018 = vadd.s32 %v1016, %v1017
        %v1019 = vrot.slane %v1018, 1
        %v1020 = vadd.s32 %v1018, %v1019
        %s1021 = vtos %v1020
        %p1022 = scmp.ge.s32.totalorder %s1021, %s398
        %s1023 = scalar_select %p1022, %s998, %s997
        %s1024 = sadd.s32 %s1023, 64
        %v1025 = vstv %s1024
        %vm1026 = vcmp.ge.s32.totalorder %v401, %v1025
        %v1027 = vsel %vm1026, 1, 0
        %v1028 = vsel %vm377, %v1027, 0
        %v1029 = vand.u32 %v1028, 65535
        %v1030 = vshrl.u32 %v1028, 16
        %v1031 = vcvt.s32.f32 %v1029
        %v1032 = vcvt.s32.f32 %v1030
        %1033 = vadd.xlane.f32.xlu0 %v1031
        %v1034 = vpop.xlane.xlu0 %1033
        %1035 = vadd.xlane.f32.xlu0 %v1032
        %v1036 = vpop.xlane.xlu0 %1035
        %v1037 = vcvt.f32.s32 %v1034
        %v1038 = vcvt.f32.s32 %v1036
        %v1039 = vshll.u32 %v1038, 16
        %v1040 = vadd.s32 %v1039, %v1037
        %v1041 = vrot.slane %v1040, 4
        %v1042 = vadd.s32 %v1040, %v1041
        %v1043 = vrot.slane %v1042, 2
        %v1044 = vadd.s32 %v1042, %v1043
        %v1045 = vrot.slane %v1044, 1
        %v1046 = vadd.s32 %v1044, %v1045
        %s1047 = vtos %v1046
        %p1048 = scmp.ge.s32.totalorder %s1047, %s398
        %s1049 = scalar_select %p1048, %s1024, %s1023
        %s1050 = sadd.s32 %s1049, 32
        %v1051 = vstv %s1050
        %vm1052 = vcmp.ge.s32.totalorder %v401, %v1051
        %v1053 = vsel %vm1052, 1, 0
        %v1054 = vsel %vm377, %v1053, 0
        %v1055 = vand.u32 %v1054, 65535
        %v1056 = vshrl.u32 %v1054, 16
        %v1057 = vcvt.s32.f32 %v1055
        %v1058 = vcvt.s32.f32 %v1056
        %1059 = vadd.xlane.f32.xlu0 %v1057
        %v1060 = vpop.xlane.xlu0 %1059
        %1061 = vadd.xlane.f32.xlu0 %v1058
        %v1062 = vpop.xlane.xlu0 %1061
        %v1063 = vcvt.f32.s32 %v1060
        %v1064 = vcvt.f32.s32 %v1062
        %v1065 = vshll.u32 %v1064, 16
        %v1066 = vadd.s32 %v1065, %v1063
        %v1067 = vrot.slane %v1066, 4
        %v1068 = vadd.s32 %v1066, %v1067
        %v1069 = vrot.slane %v1068, 2
        %v1070 = vadd.s32 %v1068, %v1069
        %v1071 = vrot.slane %v1070, 1
        %v1072 = vadd.s32 %v1070, %v1071
        %s1073 = vtos %v1072
        %p1074 = scmp.ge.s32.totalorder %s1073, %s398
        %s1075 = scalar_select %p1074, %s1050, %s1049
        %s1076 = sadd.s32 %s1075, 16
        %v1077 = vstv %s1076
        %vm1078 = vcmp.ge.s32.totalorder %v401, %v1077
        %v1079 = vsel %vm1078, 1, 0
        %v1080 = vsel %vm377, %v1079, 0
        %v1081 = vand.u32 %v1080, 65535
        %v1082 = vshrl.u32 %v1080, 16
        %v1083 = vcvt.s32.f32 %v1081
        %v1084 = vcvt.s32.f32 %v1082
        %1085 = vadd.xlane.f32.xlu0 %v1083
        %v1086 = vpop.xlane.xlu0 %1085
        %1087 = vadd.xlane.f32.xlu0 %v1084
        %v1088 = vpop.xlane.xlu0 %1087
        %v1089 = vcvt.f32.s32 %v1086
        %v1090 = vcvt.f32.s32 %v1088
        %v1091 = vshll.u32 %v1090, 16
        %v1092 = vadd.s32 %v1091, %v1089
        %v1093 = vrot.slane %v1092, 4
        %v1094 = vadd.s32 %v1092, %v1093
        %v1095 = vrot.slane %v1094, 2
        %v1096 = vadd.s32 %v1094, %v1095
        %v1097 = vrot.slane %v1096, 1
        %v1098 = vadd.s32 %v1096, %v1097
        %s1099 = vtos %v1098
        %p1100 = scmp.ge.s32.totalorder %s1099, %s398
        %s1101 = scalar_select %p1100, %s1076, %s1075
        %s1102 = sadd.s32 %s1101, 8
        %v1103 = vstv %s1102
        %vm1104 = vcmp.ge.s32.totalorder %v401, %v1103
        %v1105 = vsel %vm1104, 1, 0
        %v1106 = vsel %vm377, %v1105, 0
        %v1107 = vand.u32 %v1106, 65535
        %v1108 = vshrl.u32 %v1106, 16
        %v1109 = vcvt.s32.f32 %v1107
        %v1110 = vcvt.s32.f32 %v1108
        %1111 = vadd.xlane.f32.xlu0 %v1109
        %v1112 = vpop.xlane.xlu0 %1111
        %1113 = vadd.xlane.f32.xlu0 %v1110
        %v1114 = vpop.xlane.xlu0 %1113
        %v1115 = vcvt.f32.s32 %v1112
        %v1116 = vcvt.f32.s32 %v1114
        %v1117 = vshll.u32 %v1116, 16
        %v1118 = vadd.s32 %v1117, %v1115
        %v1119 = vrot.slane %v1118, 4
        %v1120 = vadd.s32 %v1118, %v1119
        %v1121 = vrot.slane %v1120, 2
        %v1122 = vadd.s32 %v1120, %v1121
        %v1123 = vrot.slane %v1122, 1
        %v1124 = vadd.s32 %v1122, %v1123
        %s1125 = vtos %v1124
        %p1126 = scmp.ge.s32.totalorder %s1125, %s398
        %s1127 = scalar_select %p1126, %s1102, %s1101
        %s1128 = sadd.s32 %s1127, 4
        %v1129 = vstv %s1128
        %vm1130 = vcmp.ge.s32.totalorder %v401, %v1129
        %v1131 = vsel %vm1130, 1, 0
        %v1132 = vsel %vm377, %v1131, 0
        %v1133 = vand.u32 %v1132, 65535
        %v1134 = vshrl.u32 %v1132, 16
        %v1135 = vcvt.s32.f32 %v1133
        %v1136 = vcvt.s32.f32 %v1134
        %1137 = vadd.xlane.f32.xlu0 %v1135
        %v1138 = vpop.xlane.xlu0 %1137
        %1139 = vadd.xlane.f32.xlu0 %v1136
        %v1140 = vpop.xlane.xlu0 %1139
        %v1141 = vcvt.f32.s32 %v1138
        %v1142 = vcvt.f32.s32 %v1140
        %v1143 = vshll.u32 %v1142, 16
        %v1144 = vadd.s32 %v1143, %v1141
        %v1145 = vrot.slane %v1144, 4
        %v1146 = vadd.s32 %v1144, %v1145
        %v1147 = vrot.slane %v1146, 2
        %v1148 = vadd.s32 %v1146, %v1147
        %v1149 = vrot.slane %v1148, 1
        %v1150 = vadd.s32 %v1148, %v1149
        %s1151 = vtos %v1150
        %p1152 = scmp.ge.s32.totalorder %s1151, %s398
        %s1153 = scalar_select %p1152, %s1128, %s1127
        %s1154 = sadd.s32 %s1153, 2
        %v1155 = vstv %s1154
        %vm1156 = vcmp.ge.s32.totalorder %v401, %v1155
        %v1157 = vsel %vm1156, 1, 0
        %v1158 = vsel %vm377, %v1157, 0
        %v1159 = vand.u32 %v1158, 65535
        %v1160 = vshrl.u32 %v1158, 16
        %v1161 = vcvt.s32.f32 %v1159
        %v1162 = vcvt.s32.f32 %v1160
        %1163 = vadd.xlane.f32.xlu0 %v1161
        %v1164 = vpop.xlane.xlu0 %1163
        %1165 = vadd.xlane.f32.xlu0 %v1162
        %v1166 = vpop.xlane.xlu0 %1165
        %v1167 = vcvt.f32.s32 %v1164
        %v1168 = vcvt.f32.s32 %v1166
        %v1169 = vshll.u32 %v1168, 16
        %v1170 = vadd.s32 %v1169, %v1167
        %v1171 = vrot.slane %v1170, 4
        %v1172 = vadd.s32 %v1170, %v1171
        %v1173 = vrot.slane %v1172, 2
        %v1174 = vadd.s32 %v1172, %v1173
        %v1175 = vrot.slane %v1174, 1
        %v1176 = vadd.s32 %v1174, %v1175
        %s1177 = vtos %v1176
        %p1178 = scmp.ge.s32.totalorder %s1177, %s398
        %s1179 = scalar_select %p1178, %s1154, %s1153
        %s1180 = sadd.s32 %s1179, 1
        %v1181 = vstv %s1180
        %vm1182 = vcmp.ge.s32.totalorder %v401, %v1181
        %v1183 = vsel %vm1182, 1, 0
        %v1184 = vsel %vm377, %v1183, 0
        %v1185 = vand.u32 %v1184, 65535
        %v1186 = vshrl.u32 %v1184, 16
        %v1187 = vcvt.s32.f32 %v1185
        %v1188 = vcvt.s32.f32 %v1186
        %1189 = vadd.xlane.f32.xlu0 %v1187
        %v1190 = vpop.xlane.xlu0 %1189
        %1191 = vadd.xlane.f32.xlu0 %v1188
        %v1192 = vpop.xlane.xlu0 %1191
        %v1193 = vcvt.f32.s32 %v1190
        %v1194 = vcvt.f32.s32 %v1192
        %v1195 = vshll.u32 %v1194, 16
        %v1196 = vadd.s32 %v1195, %v1193
        %v1197 = vrot.slane %v1196, 4
        %v1198 = vadd.s32 %v1196, %v1197
        %v1199 = vrot.slane %v1198, 2
        %v1200 = vadd.s32 %v1198, %v1199
        %v1201 = vrot.slane %v1200, 1
        %v1202 = vadd.s32 %v1200, %v1201
        %s1203 = vtos %v1202
        %p1204 = scmp.ge.s32.totalorder %s1203, %s398
        %s1205 = scalar_select %p1204, %s1180, %s1179
        %v1206 = vstv %s1205
        %vm1207 = vcmp.ge.s32.totalorder %v401, %v1206
        %vm1208 = vmor %vm299, %vm1207
        %v1209 = vsel %vm1208, %v375, 0.0
        %v1210 = vsel %vm377, %v1209, 0.0
        %1211 = vadd.xlane.f32.xlu0 %v1210
        %v1212 = vpop.xlane.xlu0 %1211
        %v1213 = vrot.slane %v1212, 4
        %v1214 = vadd.f32 %v1212, %v1213
        %v1215 = vrot.slane %v1214, 2
        %v1216 = vadd.f32 %v1214, %v1215
        %v1217 = vrot.slane %v1216, 1
        %v1218 = vadd.f32 %v1216, %v1217
        %s1219 = vtos %v1218
        %v1220 = vld [vmem:[%s248] sm:$0xf]
        %v1221 = vld [vmem:[%s257] sm:$0xf]
        %v1222 = vsub.f32 %v1220, %v1221
        %v1223 = vand.u32 2147483647, %v1222
        %vm1224 = vcmp.lt.f32.partialorder %v1223, 1.0
        %v1225 = vmul.f32 %v1222, 0.5
        %v1226 = vmul.f32 %v1225, %v1222
        %v1227 = vsub.f32 %v1223, 0.5
        %v1228 = vsel %vm1224, %v1226, %v1227
        %v1229 = vlaneseq
        %v1230 = vshrl.u32 %v1229, 7
        %v1231 = vsub.s32 0, %v1230
        %v1232 = vrot.slane %v376, %v1231
        %vm1233 = vcmp.eq.s32.totalorder %v1232, 1
        %v1234 = vsel %vm1233, %v1228, 0.0
        %vm1235 = vcmask 519168
        %v1236 = vsel %vm1235, %v1234, 0.0
        %1237 = vadd.xlane.f32.xlu0 %v1236
        %v1238 = vpop.xlane.xlu0 %1237
        %v1239 = vrot.slane %v1238, 4
        %v1240 = vadd.f32 %v1238, %v1239
        %v1241 = vrot.slane %v1240, 2
        %v1242 = vadd.f32 %v1240, %v1241
        %v1243 = vrot.slane %v1242, 1
        %v1244 = vadd.f32 %v1242, %v1243
        %s1245 = vtos %v1244
        %s1246 = sadd.f32 %s1245, %s1219
        %v1247 = vstv %s1246
        %v1248 = vadd.f32 %v1247, 0.0
        %1249 = vst [vmem:[%s294] sm:$0x1] %v1248
        %s1250 = scvt.s32.f32 %s397
        %v1251 = vstv %s1250
        %v1252 = vadd.f32 %v1251, 0.0
        %1253 = vst [vmem:[%s294 + $0x1] sm:$0x1] %v1252
        %s1254 = sand.u32 %s136, 1
        %s1255 = scalar_lea.sflag [#allocation4], %s1254
        %s1256 = sand.u32 %s136, 1
        %s1257 = smul.addr %s1256, 2
        %s1258 = scalar_lea.vmem [#allocation8], %s1257
        // Predicated region
        $region49: #{tpu_custom_call.1} parent=35 // pred_check
          %p1259 = pneg %p146
        $region50: #{tpu_custom_call.1} parent=35 // pred_check_branch
          %1261 = sbr.rel (%p1259) target = $region52
        $region51: #{tpu_custom_call.1} parent=35 // pred_region
          %s1263 = ssub.s32 32, 32
          %1264 = vsyncadd %s1255, %s1263
          %s1265 = smul.addr %s24, 32
          %s1266 = scalar_lea.hbm %s4, %s1265
          %s1268 = sshll.u32 %s1258, 4
          %s1269 = int_to_ptr.vmem [resolvable:$true] %s1268
          %1271 = dma.vmem_to_hbm [thread:$0]  %s1269, 32, %s1266, %s1255
        $region52: #{tpu_custom_call.1} parent=35 // pred_fallthru
          _
      $region36: #{tpu_custom_call.1} parent=5 // pred_fallthru
        _
      %p1272 = scmp.le.s32.totalorder 2, %s19
      // Predicated region
      $region53: #{tpu_custom_call.1} parent=5 // pred_check
        %p1273 = pneg %p1272
      $region54: #{tpu_custom_call.1} parent=5 // pred_check_branch
        %1275 = sbr.rel (%p1273) target = $region56
      $region55: #{tpu_custom_call.1} parent=5 // pred_region
        %s1276 = ssub.s32 %s19, 2
        // Predicated region
        $region57: #{tpu_custom_call.1} parent=55 // pred_check
          %p1277 = pneg %p152
        $region58: #{tpu_custom_call.1} parent=55 // pred_check_branch
          %1279 = sbr.rel (%p1277) target = $region60
        $region59: #{tpu_custom_call.1} parent=55 // pred_region
          %s1280 = sand.u32 %s137, 1
          %s1281 = scalar_lea.sflag [#allocation4], %s1280
          %s1282 = sand.u32 %s137, 1
          %s1283 = smul.addr %s1282, 2
          %s1284 = scalar_lea.vmem [#allocation8], %s1283
          %1285 = dma.done %s1281, 32
        $region60: #{tpu_custom_call.1} parent=55 // pred_fallthru
          _
      $region56: #{tpu_custom_call.1} parent=5 // pred_fallthru
        _
    $region6: #{tpu_custom_call.1} parent=1 // loop_footer
      %s23 = sadd.s32 1, %s19
    $region7: #{tpu_custom_call.1} parent=1 // loop_footer_branch
      %18 = sbr.rel target = $region3
    $region8: #{tpu_custom_call.1} parent=1 // loop_exit
      _
    %1286 = vsyncpa [#allocation3], 1
    %s1287 = scalar_lea.sflag [#allocation3], 1
    %1288 = vsyncpa %s1287, 1
    %1289 = vsyncpa [#allocation6], 1
    %s1290 = scalar_lea.sflag [#allocation6], 1
    %1291 = vsyncpa %s1290, 1
    %1292 = vsyncpa [#allocation4], 1
    %s1293 = scalar_lea.sflag [#allocation4], 1
    %1294 = vsyncpa %s1293, 1

</llo_original>
